<compile_context>
chip_gen: v7x
topology: tpu7x:2x2x1
jax: 0.10.0
libtpu: 0.0.40
codegen_flags: <defaults>
</compile_context>

<pallas_src>
import jax
import jax.numpy as jnp
from jax.experimental import pallas as pl
from jax.experimental.pallas import tpu as pltpu


# ------------------------------ kernel --------------------------------------
def gru_head_kernel(xf_ref, xb_ref, wx_ref, bx_ref, wh_ref, bh_ref,
                    wfc_ref, bfc_ref, feat_ref, out_ref, h_scr):
    t = pl.program_id(0)
    n_steps = feat_ref.shape[0]      # N (static)
    h2 = h_scr.shape[1]              # 2 * hidden  (= 128, lane-dense)
    h1 = h2 // 2                     # hidden

    @pl.when(t == 0)
    def _init():
        h_scr[...] = jnp.zeros_like(h_scr)

    x_f = xf_ref[0]                                   # (B, C)  timestep t
    x_b = xb_ref[0]                                   # (B, C)  timestep N-1-t
    x_cat = jnp.concatenate([x_f, x_b], axis=-1)      # (B, 2C)
    h = h_scr[...]                                    # (B, 2H) = [h_fwd | h_bwd]

    # Fused (both directions) gate projections: columns [r_f r_b | z_f z_b | n_f n_b]
    xg = jnp.dot(x_cat, wx_ref[...],
                 preferred_element_type=jnp.float32) + bx_ref[...]   # (B, 6H)
    hg = jnp.dot(h, wh_ref[...],
                 preferred_element_type=jnp.float32) + bh_ref[...]   # (B, 6H)

    r = jax.nn.sigmoid(xg[:, 0:h2] + hg[:, 0:h2])
    z = jax.nn.sigmoid(xg[:, h2:2 * h2] + hg[:, h2:2 * h2])
    n = jnp.tanh(xg[:, 2 * h2:3 * h2] + r * hg[:, 2 * h2:3 * h2])
    h_new = (1.0 - z) * n + z * h
    h_scr[...] = h_new

    # Scatter pre-ReLU hidden states into the resident (N, B, 2H) feature block.
    feat_ref[t, :, 0:h1] = h_new[:, 0:h1]                     # forward dir @ t
    feat_ref[n_steps - 1 - t, :, h1:h2] = h_new[:, h1:h2]     # backward dir @ N-1-t

    # Epilogue on the last step: ReLU + fc head entirely in VMEM.
    @pl.when(t == n_steps - 1)
    def _epilogue():
        for j in range(n_steps):     # static unroll; N is small
            fj = jnp.maximum(feat_ref[j], 0.0)                # (B, 2H)
            feat_ref[j] = fj
            out_ref[j] = (jnp.dot(fj, wfc_ref[...],
                                  preferred_element_type=jnp.float32)
                          + bfc_ref[...])                     # (B, K_pad)


# ------------------------- weight repacking (wrapper) ------------------------
def _pack_gate_weights(w_f, w_b, rows_f, rows_b, n_rows, H):
    """PyTorch (3H, d) weights of both directions -> block-diagonal (n_rows, 6H)
    with column layout [r_f | r_b | z_f | z_b | n_f | n_b]."""
    W = jnp.zeros((n_rows, 6 * H), jnp.float32)
    for g in range(3):               # PyTorch gate order: r, z, n
        W = W.at[rows_f, 2 * g * H:(2 * g + 1) * H].set(
            jnp.transpose(w_f[g * H:(g + 1) * H, :]))
        W = W.at[rows_b, (2 * g + 1) * H:(2 * g + 2) * H].set(
            jnp.transpose(w_b[g * H:(g + 1) * H, :]))
    return W


def _pack_gate_bias(b_f, b_b, H):
    segs = []
    for g in range(3):
        segs.append(b_f[g * H:(g + 1) * H])
        segs.append(b_b[g * H:(g + 1) * H])
    return jnp.concatenate(segs).reshape(1, 6 * H)


# ------------------------------ forward --------------------------------------
def gru_head_forward(x, params, n_class):
    B, N, C = x.shape
    H = params["w_hh_f"].shape[1]
    H2 = 2 * H
    G = 6 * H
    KP = ((n_class + 127) // 128) * 128          # lane-dense fc output width

    wx = _pack_gate_weights(params["w_ih_f"], params["w_ih_b"],
                            slice(0, C), slice(C, 2 * C), 2 * C, H)
    wh = _pack_gate_weights(params["w_hh_f"], params["w_hh_b"],
                            slice(0, H), slice(H, 2 * H), 2 * H, H)
    bx = _pack_gate_bias(params["b_ih_f"], params["b_ih_b"], H)
    bh = _pack_gate_bias(params["b_hh_f"], params["b_hh_b"], H)
    wfc = jnp.zeros((H2, KP), jnp.float32).at[:, :n_class].set(params["fc_w"].T)
    bfc = jnp.zeros((1, KP), jnp.float32).at[0, :n_class].set(params["fc_b"])

    x_tm = jnp.transpose(x, (1, 0, 2))           # time-major (N, B, C)

    grid_spec = pltpu.PrefetchScalarGridSpec(
        num_scalar_prefetch=0,
        grid=(N,),
        in_specs=[
            pl.BlockSpec((1, B, C), lambda t: (t, 0, 0)),          # x, forward dir
            pl.BlockSpec((1, B, C), lambda t: (N - 1 - t, 0, 0)),  # x, backward dir
            pl.BlockSpec((2 * C, G), lambda t: (0, 0)),            # Wx (resident)
            pl.BlockSpec((1, G), lambda t: (0, 0)),                # bx
            pl.BlockSpec((H2, G), lambda t: (0, 0)),               # Wh
            pl.BlockSpec((1, G), lambda t: (0, 0)),                # bh
            pl.BlockSpec((H2, KP), lambda t: (0, 0)),              # W_fc (padded)
            pl.BlockSpec((1, KP), lambda t: (0, 0)),               # b_fc (padded)
        ],
        out_specs=[
            pl.BlockSpec((N, B, H2), lambda t: (0, 0, 0)),         # feature (resident)
            pl.BlockSpec((N, B, KP), lambda t: (0, 0, 0)),         # fc output (resident)
        ],
        scratch_shapes=[pltpu.VMEM((B, H2), jnp.float32)],         # carried hidden state
    )

    feat_tm, out_tm = pl.pallas_call(
        gru_head_kernel,
        out_shape=(jax.ShapeDtypeStruct((N, B, H2), jnp.float32),
                   jax.ShapeDtypeStruct((N, B, KP), jnp.float32)),
        grid_spec=grid_spec,
        compiler_params=pltpu.CompilerParams(
            dimension_semantics=("arbitrary",)),                   # sequential recurrence
    )(x_tm, x_tm, wx, bx, wh, bh, wfc, bfc)

    feature = jnp.transpose(feat_tm, (1, 0, 2))                    # (B, N, 2H)
    output = jnp.transpose(out_tm, (1, 0, 2))[:, :, :n_class]      # (B, N, n_class)
    return {"output": output, "feature": feature}


# ---------------------------- pure-JAX reference -----------------------------
def gru_head_reference(x, params, n_class):
    B, N, C = x.shape
    H = params["w_hh_f"].shape[1]

    def cell(x_t, h, w_ih, w_hh, b_ih, b_hh):
        gi = x_t @ w_ih.T + b_ih
        gh = h @ w_hh.T + b_hh
        i_r, i_z, i_n = jnp.split(gi, 3, axis=-1)
        h_r, h_z, h_n = jnp.split(gh, 3, axis=-1)
        r = jax.nn.sigmoid(i_r + h_r)
        z = jax.nn.sigmoid(i_z + h_z)
        n = jnp.tanh(i_n + r * h_n)
        return (1.0 - z) * n + z * h

    h_f = jnp.zeros((B, H), jnp.float32)
    fwd = []
    for t in range(N):
        h_f = cell(x[:, t], h_f, params["w_ih_f"], params["w_hh_f"],
                   params["b_ih_f"], params["b_hh_f"])
        fwd.append(h_f)
    h_b = jnp.zeros((B, H), jnp.float32)
    bwd = [None] * N
    for t in range(N - 1, -1, -1):
        h_b = cell(x[:, t], h_b, params["w_ih_b"], params["w_hh_b"],
                   params["b_ih_b"], params["b_hh_b"])
        bwd[t] = h_b
    gru_out = jnp.concatenate([jnp.stack(fwd, 1), jnp.stack(bwd, 1)], axis=-1)
    f0 = jnp.maximum(gru_out, 0.0)
    out = f0 @ params["fc_w"].T + params["fc_b"]
    return {"output": out, "feature": f0}


# ---------------------------------- main --------------------------------------
def init_params(key, input_dim, hidden_dim, n_class):
    ks = jax.random.split(key, 10)
    s = 0.1
    H, C = hidden_dim, input_dim
    return {
        "w_ih_f": s * jax.random.normal(ks[0], (3 * H, C), jnp.float32),
        "w_hh_f": s * jax.random.normal(ks[1], (3 * H, H), jnp.float32),
        "b_ih_f": s * jax.random.normal(ks[2], (3 * H,), jnp.float32),
        "b_hh_f": s * jax.random.normal(ks[3], (3 * H,), jnp.float32),
        "w_ih_b": s * jax.random.normal(ks[4], (3 * H, C), jnp.float32),
        "w_hh_b": s * jax.random.normal(ks[5], (3 * H, H), jnp.float32),
        "b_ih_b": s * jax.random.normal(ks[6], (3 * H,), jnp.float32),
        "b_hh_b": s * jax.random.normal(ks[7], (3 * H,), jnp.float32),
        "fc_w":   s * jax.random.normal(ks[8], (n_class, 2 * H), jnp.float32),
        "fc_b":   s * jax.random.normal(ks[9], (n_class,), jnp.float32),
    }


if __name__ == "__main__":
    B, N, C = 2, 8, 32        # batch, sequence length, input_dim
    H = 64                    # hidden_dim  -> feature dim 2H = 128 (lane-dense)
    n_class = 8               # GRU_Head default

    key = jax.random.PRNGKey(0)
    kx, kp = jax.random.split(key)
    x = jax.random.normal(kx, (B, N, C), jnp.float32)
    params = init_params(kp, C, H, n_class)

    result = gru_head_forward(x, params, n_class)
    jax.block_until_ready(result)

    ref = gru_head_reference(x, params, n_class)
    assert result["output"].shape == (B, N, n_class)
    assert result["feature"].shape == (B, N, 2 * H)
    assert jnp.allclose(result["feature"], ref["feature"], atol=1e-4, rtol=1e-4)
    assert jnp.allclose(result["output"], ref["output"], atol=1e-4, rtol=1e-4)

    print("KERNEL_OK")
</pallas_src>

<mosaic_0001>
module attributes {stable_mosaic.version = 11 : i64} {
  func.func @gru_head_kernel(%arg0: i32, %arg1: memref<1x2x32xf32, #tpu.memory_space<vmem>>, %arg2: memref<1x2x32xf32, #tpu.memory_space<vmem>>, %arg3: memref<64x384xf32, #tpu.memory_space<vmem>>, %arg4: memref<1x384xf32, #tpu.memory_space<vmem>>, %arg5: memref<128x384xf32, #tpu.memory_space<vmem>>, %arg6: memref<1x384xf32, #tpu.memory_space<vmem>>, %arg7: memref<128x128xf32, #tpu.memory_space<vmem>>, %arg8: memref<1x128xf32, #tpu.memory_space<vmem>>, %arg9: memref<8x2x128xf32, #tpu.memory_space<vmem>>, %arg10: memref<8x2x128xf32, #tpu.memory_space<vmem>>, %arg11: memref<2x128xf32, #tpu.memory_space<vmem>>) attributes {dimension_semantics = [#tpu.dimension_semantics<arbitrary>], iteration_bounds = array<i64: 8>, scalar_prefetch = 0 : i64, scratch_operands = 1 : i64, tpu.core_type = #tpu.core_type<tc>, window_params = [{transform_indices = @transform_0, window_bounds = array<i64: 1, 2, 32>}, {transform_indices = @transform_1, window_bounds = array<i64: 1, 2, 32>}, {pipeline_mode = #tpu.pipeline_mode<synchronous>, transform_indices = @transform_2, window_bounds = array<i64: 64, 384>}, {pipeline_mode = #tpu.pipeline_mode<synchronous>, transform_indices = @transform_3, window_bounds = array<i64: 1, 384>}, {pipeline_mode = #tpu.pipeline_mode<synchronous>, transform_indices = @transform_4, window_bounds = array<i64: 128, 384>}, {pipeline_mode = #tpu.pipeline_mode<synchronous>, transform_indices = @transform_5, window_bounds = array<i64: 1, 384>}, {pipeline_mode = #tpu.pipeline_mode<synchronous>, transform_indices = @transform_6, window_bounds = array<i64: 128, 128>}, {pipeline_mode = #tpu.pipeline_mode<synchronous>, transform_indices = @transform_7, window_bounds = array<i64: 1, 128>}, {pipeline_mode = #tpu.pipeline_mode<synchronous>, transform_indices = @transform_8, window_bounds = array<i64: 8, 2, 128>}, {pipeline_mode = #tpu.pipeline_mode<synchronous>, transform_indices = @transform_9, window_bounds = array<i64: 8, 2, 128>}]} {
    %c0_i32 = arith.constant 0 : i32
    %0 = arith.cmpi eq, %arg0, %c0_i32 : i32
    %1 = arith.extui %0 : i1 to i32
    %c0_i32_0 = arith.constant 0 : i32
    %2 = arith.cmpi ne, %1, %c0_i32_0 : i32
    scf.if %2 {
      %cst_27 = arith.constant 0.000000e+00 : f32
      %60 = vector.broadcast %cst_27 : f32 to vector<2x128xf32>
      %c0_28 = arith.constant 0 : index
      %c0_29 = arith.constant 0 : index
      %61 = vector.load %arg11[%c0_28, %c0_29] : memref<2x128xf32, #tpu.memory_space<vmem>>, vector<2x128xf32>
      tpu.vector_store %arg11[%c0_28, %c0_29], %60 {strides = array<i32>} : memref<2x128xf32, #tpu.memory_space<vmem>>, vector<2x128xf32>,
    } else {
    }
    %c0 = arith.constant 0 : index
    %c0_1 = arith.constant 0 : index
    %c0_2 = arith.constant 0 : index
    %3 = vector.load %arg1[%c0, %c0_1, %c0_2] : memref<1x2x32xf32, #tpu.memory_space<vmem>>, vector<1x2x32xf32>
    %4 = vector.shape_cast %3 : vector<1x2x32xf32> to vector<2x32xf32>
    %c0_3 = arith.constant 0 : index
    %c0_4 = arith.constant 0 : index
    %c0_5 = arith.constant 0 : index
    %5 = vector.load %arg2[%c0_3, %c0_4, %c0_5] : memref<1x2x32xf32, #tpu.memory_space<vmem>>, vector<1x2x32xf32>
    %6 = vector.shape_cast %5 : vector<1x2x32xf32> to vector<2x32xf32>
    %7 = tpu.concatenate %4, %6 in 1 : vector<2x32xf32>, vector<2x32xf32> -> vector<2x64xf32>
    %c0_6 = arith.constant 0 : index
    %c0_7 = arith.constant 0 : index
    %8 = vector.load %arg11[%c0_6, %c0_7] : memref<2x128xf32, #tpu.memory_space<vmem>>, vector<2x128xf32>
    %c0_8 = arith.constant 0 : index
    %c0_9 = arith.constant 0 : index
    %9 = vector.load %arg3[%c0_8, %c0_9] : memref<64x384xf32, #tpu.memory_space<vmem>>, vector<64x384xf32>
    %cst = arith.constant dense<0.000000e+00> : vector<2x384xf32>
    %10 = tpu.matmul %7, %9, %cst {dimension_numbers = #tpu.dot_dimension_numbers<[1], [0], [0], [1], [0, 0, 1, 1], [], []>} : vector<2x64xf32>, vector<64x384xf32>, vector<2x384xf32> -> vector<2x384xf32>
    %c0_10 = arith.constant 0 : index
    %c0_11 = arith.constant 0 : index
    %11 = vector.load %arg4[%c0_10, %c0_11] : memref<1x384xf32, #tpu.memory_space<vmem>>, vector<1x384xf32>
    %12 = vector.broadcast %11 : vector<1x384xf32> to vector<2x384xf32>
    %13 = arith.addf %10, %12 : vector<2x384xf32>
    %c0_12 = arith.constant 0 : index
    %c0_13 = arith.constant 0 : index
    %14 = vector.load %arg5[%c0_12, %c0_13] : memref<128x384xf32, #tpu.memory_space<vmem>>, vector<128x384xf32>
    %cst_14 = arith.constant dense<0.000000e+00> : vector<2x384xf32>
    %15 = tpu.matmul %8, %14, %cst_14 {dimension_numbers = #tpu.dot_dimension_numbers<[1], [0], [0], [1], [0, 0, 1, 1], [], []>} : vector<2x128xf32>, vector<128x384xf32>, vector<2x384xf32> -> vector<2x384xf32>
    %c0_15 = arith.constant 0 : index
    %c0_16 = arith.constant 0 : index
    %16 = vector.load %arg6[%c0_15, %c0_16] : memref<1x384xf32, #tpu.memory_space<vmem>>, vector<1x384xf32>
    %17 = vector.broadcast %16 : vector<1x384xf32> to vector<2x384xf32>
    %18 = arith.addf %15, %17 : vector<2x384xf32>
    %19 = vector.extract_strided_slice %13 {offsets = [0, 0], sizes = [2, 128], strides = [1, 1]} : vector<2x384xf32> to vector<2x128xf32>
    %20 = vector.extract_strided_slice %18 {offsets = [0, 0], sizes = [2, 128], strides = [1, 1]} : vector<2x384xf32> to vector<2x128xf32>
    %21 = arith.addf %19, %20 : vector<2x128xf32>
    %22 = arith.negf %21 : vector<2x128xf32>
    %23 = math.exp %22 : vector<2x128xf32>
    %cst_17 = arith.constant 1.000000e+00 : f32
    %24 = vector.broadcast %cst_17 : f32 to vector<2x128xf32>
    %25 = arith.addf %24, %23 : vector<2x128xf32>
    %26 = arith.divf %24, %25 : vector<2x128xf32>
    %27 = vector.extract_strided_slice %13 {offsets = [0, 128], sizes = [2, 128], strides = [1, 1]} : vector<2x384xf32> to vector<2x128xf32>
    %28 = vector.extract_strided_slice %18 {offsets = [0, 128], sizes = [2, 128], strides = [1, 1]} : vector<2x384xf32> to vector<2x128xf32>
    %29 = arith.addf %27, %28 : vector<2x128xf32>
    %30 = arith.negf %29 : vector<2x128xf32>
    %31 = math.exp %30 : vector<2x128xf32>
    %cst_18 = arith.constant 1.000000e+00 : f32
    %32 = vector.broadcast %cst_18 : f32 to vector<2x128xf32>
    %33 = arith.addf %32, %31 : vector<2x128xf32>
    %34 = arith.divf %32, %33 : vector<2x128xf32>
    %35 = vector.extract_strided_slice %13 {offsets = [0, 256], sizes = [2, 128], strides = [1, 1]} : vector<2x384xf32> to vector<2x128xf32>
    %36 = vector.extract_strided_slice %18 {offsets = [0, 256], sizes = [2, 128], strides = [1, 1]} : vector<2x384xf32> to vector<2x128xf32>
    %37 = arith.mulf %26, %36 : vector<2x128xf32>
    %38 = arith.addf %35, %37 : vector<2x128xf32>
    %39 = math.tanh %38 : vector<2x128xf32>
    %cst_19 = arith.constant 1.000000e+00 : f32
    %40 = vector.broadcast %cst_19 : f32 to vector<2x128xf32>
    %41 = arith.subf %40, %34 : vector<2x128xf32>
    %42 = arith.mulf %41, %39 : vector<2x128xf32>
    %43 = arith.mulf %34, %8 : vector<2x128xf32>
    %44 = arith.addf %42, %43 : vector<2x128xf32>
    %c0_20 = arith.constant 0 : index
    %c0_21 = arith.constant 0 : index
    %45 = vector.load %arg11[%c0_20, %c0_21] : memref<2x128xf32, #tpu.memory_space<vmem>>, vector<2x128xf32>
    tpu.vector_store %arg11[%c0_20, %c0_21], %44 {strides = array<i32>} : memref<2x128xf32, #tpu.memory_space<vmem>>, vector<2x128xf32>,
    %46 = vector.extract_strided_slice %44 {offsets = [0, 0], sizes = [2, 64], strides = [1, 1]} : vector<2x128xf32> to vector<2x64xf32>
    %47 = arith.index_cast %arg0 : i32 to index
    %c0_22 = arith.constant 0 : index
    %c0_23 = arith.constant 0 : index
    %48 = vector.load %arg9[%47, %c0_22, %c0_23] : memref<8x2x128xf32, #tpu.memory_space<vmem>>, vector<1x2x64xf32>
    %49 = vector.shape_cast %48 : vector<1x2x64xf32> to vector<2x64xf32>
    %50 = vector.shape_cast %46 : vector<2x64xf32> to vector<1x2x64xf32>
    tpu.vector_store %arg9[%47, %c0_22, %c0_23], %50 {strides = array<i32>} : memref<8x2x128xf32, #tpu.memory_space<vmem>>, vector<1x2x64xf32>,
    %51 = vector.extract_strided_slice %44 {offsets = [0, 64], sizes = [2, 64], strides = [1, 1]} : vector<2x128xf32> to vector<2x64xf32>
    %c7_i32 = arith.constant 7 : i32
    %52 = arith.subi %c7_i32, %arg0 : i32
    %53 = arith.index_cast %52 : i32 to index
    %c0_24 = arith.constant 0 : index
    %c64 = arith.constant 64 : index
    %54 = vector.load %arg9[%53, %c0_24, %c64] : memref<8x2x128xf32, #tpu.memory_space<vmem>>, vector<1x2x64xf32>
    %55 = vector.shape_cast %54 : vector<1x2x64xf32> to vector<2x64xf32>
    %56 = vector.shape_cast %51 : vector<2x64xf32> to vector<1x2x64xf32>
    tpu.vector_store %arg9[%53, %c0_24, %c64], %56 {strides = array<i32>} : memref<8x2x128xf32, #tpu.memory_space<vmem>>, vector<1x2x64xf32>,
    %c7_i32_25 = arith.constant 7 : i32
    %57 = arith.cmpi eq, %arg0, %c7_i32_25 : i32
    %58 = arith.extui %57 : i1 to i32
    %c0_i32_26 = arith.constant 0 : i32
    %59 = arith.cmpi ne, %58, %c0_i32_26 : i32
    scf.if %59 {
      %c0_27 = arith.constant 0 : index
      %c0_28 = arith.constant 0 : index
      %c0_29 = arith.constant 0 : index
      %60 = vector.load %arg9[%c0_27, %c0_28, %c0_29] : memref<8x2x128xf32, #tpu.memory_space<vmem>>, vector<1x2x128xf32>
      %61 = vector.shape_cast %60 : vector<1x2x128xf32> to vector<2x128xf32>
      %cst_30 = arith.constant 0.000000e+00 : f32
      %62 = vector.broadcast %cst_30 : f32 to vector<2x128xf32>
      %63 = arith.maximumf %61, %62 : vector<2x128xf32>
      %c0_31 = arith.constant 0 : index
      %c0_32 = arith.constant 0 : index
      %c0_33 = arith.constant 0 : index
      %64 = vector.load %arg9[%c0_31, %c0_32, %c0_33] : memref<8x2x128xf32, #tpu.memory_space<vmem>>, vector<1x2x128xf32>
      %65 = vector.shape_cast %64 : vector<1x2x128xf32> to vector<2x128xf32>
      %66 = vector.shape_cast %63 : vector<2x128xf32> to vector<1x2x128xf32>
      tpu.vector_store %arg9[%c0_31, %c0_32, %c0_33], %66 {strides = array<i32>} : memref<8x2x128xf32, #tpu.memory_space<vmem>>, vector<1x2x128xf32>,
      %c0_34 = arith.constant 0 : index
      %c0_35 = arith.constant 0 : index
      %67 = vector.load %arg7[%c0_34, %c0_35] : memref<128x128xf32, #tpu.memory_space<vmem>>, vector<128x128xf32>
      %cst_36 = arith.constant dense<0.000000e+00> : vector<2x128xf32>
      %68 = tpu.matmul %63, %67, %cst_36 {dimension_numbers = #tpu.dot_dimension_numbers<[1], [0], [0], [1], [0, 0, 1, 1], [], []>} : vector<2x128xf32>, vector<128x128xf32>, vector<2x128xf32> -> vector<2x128xf32>
      %c0_37 = arith.constant 0 : index
      %c0_38 = arith.constant 0 : index
      %69 = vector.load %arg8[%c0_37, %c0_38] : memref<1x128xf32, #tpu.memory_space<vmem>>, vector<1x128xf32>
      %70 = vector.broadcast %69 : vector<1x128xf32> to vector<2x128xf32>
      %71 = arith.addf %68, %70 : vector<2x128xf32>
      %c0_39 = arith.constant 0 : index
      %c0_40 = arith.constant 0 : index
      %c0_41 = arith.constant 0 : index
      %72 = vector.load %arg10[%c0_39, %c0_40, %c0_41] : memref<8x2x128xf32, #tpu.memory_space<vmem>>, vector<1x2x128xf32>
      %73 = vector.shape_cast %72 : vector<1x2x128xf32> to vector<2x128xf32>
      %74 = vector.shape_cast %71 : vector<2x128xf32> to vector<1x2x128xf32>
      tpu.vector_store %arg10[%c0_39, %c0_40, %c0_41], %74 {strides = array<i32>} : memref<8x2x128xf32, #tpu.memory_space<vmem>>, vector<1x2x128xf32>,
      %c1 = arith.constant 1 : index
      %c0_42 = arith.constant 0 : index
      %c0_43 = arith.constant 0 : index
      %75 = vector.load %arg9[%c1, %c0_42, %c0_43] : memref<8x2x128xf32, #tpu.memory_space<vmem>>, vector<1x2x128xf32>
      %76 = vector.shape_cast %75 : vector<1x2x128xf32> to vector<2x128xf32>
      %cst_44 = arith.constant 0.000000e+00 : f32
      %77 = vector.broadcast %cst_44 : f32 to vector<2x128xf32>
      %78 = arith.maximumf %76, %77 : vector<2x128xf32>
      %c1_45 = arith.constant 1 : index
      %c0_46 = arith.constant 0 : index
      %c0_47 = arith.constant 0 : index
      %79 = vector.load %arg9[%c1_45, %c0_46, %c0_47] : memref<8x2x128xf32, #tpu.memory_space<vmem>>, vector<1x2x128xf32>
      %80 = vector.shape_cast %79 : vector<1x2x128xf32> to vector<2x128xf32>
      %81 = vector.shape_cast %78 : vector<2x128xf32> to vector<1x2x128xf32>
      tpu.vector_store %arg9[%c1_45, %c0_46, %c0_47], %81 {strides = array<i32>} : memref<8x2x128xf32, #tpu.memory_space<vmem>>, vector<1x2x128xf32>,
      %c0_48 = arith.constant 0 : index
      %c0_49 = arith.constant 0 : index
      %82 = vector.load %arg7[%c0_48, %c0_49] : memref<128x128xf32, #tpu.memory_space<vmem>>, vector<128x128xf32>
      %cst_50 = arith.constant dense<0.000000e+00> : vector<2x128xf32>
      %83 = tpu.matmul %78, %82, %cst_50 {dimension_numbers = #tpu.dot_dimension_numbers<[1], [0], [0], [1], [0, 0, 1, 1], [], []>} : vector<2x128xf32>, vector<128x128xf32>, vector<2x128xf32> -> vector<2x128xf32>
      %c0_51 = arith.constant 0 : index
      %c0_52 = arith.constant 0 : index
      %84 = vector.load %arg8[%c0_51, %c0_52] : memref<1x128xf32, #tpu.memory_space<vmem>>, vector<1x128xf32>
      %85 = vector.broadcast %84 : vector<1x128xf32> to vector<2x128xf32>
      %86 = arith.addf %83, %85 : vector<2x128xf32>
      %c1_53 = arith.constant 1 : index
      %c0_54 = arith.constant 0 : index
      %c0_55 = arith.constant 0 : index
      %87 = vector.load %arg10[%c1_53, %c0_54, %c0_55] : memref<8x2x128xf32, #tpu.memory_space<vmem>>, vector<1x2x128xf32>
      %88 = vector.shape_cast %87 : vector<1x2x128xf32> to vector<2x128xf32>
      %89 = vector.shape_cast %86 : vector<2x128xf32> to vector<1x2x128xf32>
      tpu.vector_store %arg10[%c1_53, %c0_54, %c0_55], %89 {strides = array<i32>} : memref<8x2x128xf32, #tpu.memory_space<vmem>>, vector<1x2x128xf32>,
      %c2 = arith.constant 2 : index
      %c0_56 = arith.constant 0 : index
      %c0_57 = arith.constant 0 : index
      %90 = vector.load %arg9[%c2, %c0_56, %c0_57] : memref<8x2x128xf32, #tpu.memory_space<vmem>>, vector<1x2x128xf32>
      %91 = vector.shape_cast %90 : vector<1x2x128xf32> to vector<2x128xf32>
      %cst_58 = arith.constant 0.000000e+00 : f32
      %92 = vector.broadcast %cst_58 : f32 to vector<2x128xf32>
      %93 = arith.maximumf %91, %92 : vector<2x128xf32>
      %c2_59 = arith.constant 2 : index
      %c0_60 = arith.constant 0 : index
      %c0_61 = arith.constant 0 : index
      %94 = vector.load %arg9[%c2_59, %c0_60, %c0_61] : memref<8x2x128xf32, #tpu.memory_space<vmem>>, vector<1x2x128xf32>
      %95 = vector.shape_cast %94 : vector<1x2x128xf32> to vector<2x128xf32>
      %96 = vector.shape_cast %93 : vector<2x128xf32> to vector<1x2x128xf32>
      tpu.vector_store %arg9[%c2_59, %c0_60, %c0_61], %96 {strides = array<i32>} : memref<8x2x128xf32, #tpu.memory_space<vmem>>, vector<1x2x128xf32>,
      %c0_62 = arith.constant 0 : index
      %c0_63 = arith.constant 0 : index
      %97 = vector.load %arg7[%c0_62, %c0_63] : memref<128x128xf32, #tpu.memory_space<vmem>>, vector<128x128xf32>
      %cst_64 = arith.constant dense<0.000000e+00> : vector<2x128xf32>
      %98 = tpu.matmul %93, %97, %cst_64 {dimension_numbers = #tpu.dot_dimension_numbers<[1], [0], [0], [1], [0, 0, 1, 1], [], []>} : vector<2x128xf32>, vector<128x128xf32>, vector<2x128xf32> -> vector<2x128xf32>
      %c0_65 = arith.constant 0 : index
      %c0_66 = arith.constant 0 : index
      %99 = vector.load %arg8[%c0_65, %c0_66] : memref<1x128xf32, #tpu.memory_space<vmem>>, vector<1x128xf32>
      %100 = vector.broadcast %99 : vector<1x128xf32> to vector<2x128xf32>
      %101 = arith.addf %98, %100 : vector<2x128xf32>
      %c2_67 = arith.constant 2 : index
      %c0_68 = arith.constant 0 : index
      %c0_69 = arith.constant 0 : index
      %102 = vector.load %arg10[%c2_67, %c0_68, %c0_69] : memref<8x2x128xf32, #tpu.memory_space<vmem>>, vector<1x2x128xf32>
      %103 = vector.shape_cast %102 : vector<1x2x128xf32> to vector<2x128xf32>
      %104 = vector.shape_cast %101 : vector<2x128xf32> to vector<1x2x128xf32>
      tpu.vector_store %arg10[%c2_67, %c0_68, %c0_69], %104 {strides = array<i32>} : memref<8x2x128xf32, #tpu.memory_space<vmem>>, vector<1x2x128xf32>,
      %c3 = arith.constant 3 : index
      %c0_70 = arith.constant 0 : index
      %c0_71 = arith.constant 0 : index
      %105 = vector.load %arg9[%c3, %c0_70, %c0_71] : memref<8x2x128xf32, #tpu.memory_space<vmem>>, vector<1x2x128xf32>
      %106 = vector.shape_cast %105 : vector<1x2x128xf32> to vector<2x128xf32>
      %cst_72 = arith.constant 0.000000e+00 : f32
      %107 = vector.broadcast %cst_72 : f32 to vector<2x128xf32>
      %108 = arith.maximumf %106, %107 : vector<2x128xf32>
      %c3_73 = arith.constant 3 : index
      %c0_74 = arith.constant 0 : index
      %c0_75 = arith.constant 0 : index
      %109 = vector.load %arg9[%c3_73, %c0_74, %c0_75] : memref<8x2x128xf32, #tpu.memory_space<vmem>>, vector<1x2x128xf32>
      %110 = vector.shape_cast %109 : vector<1x2x128xf32> to vector<2x128xf32>
      %111 = vector.shape_cast %108 : vector<2x128xf32> to vector<1x2x128xf32>
      tpu.vector_store %arg9[%c3_73, %c0_74, %c0_75], %111 {strides = array<i32>} : memref<8x2x128xf32, #tpu.memory_space<vmem>>, vector<1x2x128xf32>,
      %c0_76 = arith.constant 0 : index
      %c0_77 = arith.constant 0 : index
      %112 = vector.load %arg7[%c0_76, %c0_77] : memref<128x128xf32, #tpu.memory_space<vmem>>, vector<128x128xf32>
      %cst_78 = arith.constant dense<0.000000e+00> : vector<2x128xf32>
      %113 = tpu.matmul %108, %112, %cst_78 {dimension_numbers = #tpu.dot_dimension_numbers<[1], [0], [0], [1], [0, 0, 1, 1], [], []>} : vector<2x128xf32>, vector<128x128xf32>, vector<2x128xf32> -> vector<2x128xf32>
      %c0_79 = arith.constant 0 : index
      %c0_80 = arith.constant 0 : index
      %114 = vector.load %arg8[%c0_79, %c0_80] : memref<1x128xf32, #tpu.memory_space<vmem>>, vector<1x128xf32>
      %115 = vector.broadcast %114 : vector<1x128xf32> to vector<2x128xf32>
      %116 = arith.addf %113, %115 : vector<2x128xf32>
      %c3_81 = arith.constant 3 : index
      %c0_82 = arith.constant 0 : index
      %c0_83 = arith.constant 0 : index
      %117 = vector.load %arg10[%c3_81, %c0_82, %c0_83] : memref<8x2x128xf32, #tpu.memory_space<vmem>>, vector<1x2x128xf32>
      %118 = vector.shape_cast %117 : vector<1x2x128xf32> to vector<2x128xf32>
      %119 = vector.shape_cast %116 : vector<2x128xf32> to vector<1x2x128xf32>
      tpu.vector_store %arg10[%c3_81, %c0_82, %c0_83], %119 {strides = array<i32>} : memref<8x2x128xf32, #tpu.memory_space<vmem>>, vector<1x2x128xf32>,
      %c4 = arith.constant 4 : index
      %c0_84 = arith.constant 0 : index
      %c0_85 = arith.constant 0 : index
      %120 = vector.load %arg9[%c4, %c0_84, %c0_85] : memref<8x2x128xf32, #tpu.memory_space<vmem>>, vector<1x2x128xf32>
      %121 = vector.shape_cast %120 : vector<1x2x128xf32> to vector<2x128xf32>
      %cst_86 = arith.constant 0.000000e+00 : f32
      %122 = vector.broadcast %cst_86 : f32 to vector<2x128xf32>
      %123 = arith.maximumf %121, %122 : vector<2x128xf32>
      %c4_87 = arith.constant 4 : index
      %c0_88 = arith.constant 0 : index
      %c0_89 = arith.constant 0 : index
      %124 = vector.load %arg9[%c4_87, %c0_88, %c0_89] : memref<8x2x128xf32, #tpu.memory_space<vmem>>, vector<1x2x128xf32>
      %125 = vector.shape_cast %124 : vector<1x2x128xf32> to vector<2x128xf32>
      %126 = vector.shape_cast %123 : vector<2x128xf32> to vector<1x2x128xf32>
      tpu.vector_store %arg9[%c4_87, %c0_88, %c0_89], %126 {strides = array<i32>} : memref<8x2x128xf32, #tpu.memory_space<vmem>>, vector<1x2x128xf32>,
      %c0_90 = arith.constant 0 : index
      %c0_91 = arith.constant 0 : index
      %127 = vector.load %arg7[%c0_90, %c0_91] : memref<128x128xf32, #tpu.memory_space<vmem>>, vector<128x128xf32>
      %cst_92 = arith.constant dense<0.000000e+00> : vector<2x128xf32>
      %128 = tpu.matmul %123, %127, %cst_92 {dimension_numbers = #tpu.dot_dimension_numbers<[1], [0], [0], [1], [0, 0, 1, 1], [], []>} : vector<2x128xf32>, vector<128x128xf32>, vector<2x128xf32> -> vector<2x128xf32>
      %c0_93 = arith.constant 0 : index
      %c0_94 = arith.constant 0 : index
      %129 = vector.load %arg8[%c0_93, %c0_94] : memref<1x128xf32, #tpu.memory_space<vmem>>, vector<1x128xf32>
      %130 = vector.broadcast %129 : vector<1x128xf32> to vector<2x128xf32>
      %131 = arith.addf %128, %130 : vector<2x128xf32>
      %c4_95 = arith.constant 4 : index
      %c0_96 = arith.constant 0 : index
      %c0_97 = arith.constant 0 : index
      %132 = vector.load %arg10[%c4_95, %c0_96, %c0_97] : memref<8x2x128xf32, #tpu.memory_space<vmem>>, vector<1x2x128xf32>
      %133 = vector.shape_cast %132 : vector<1x2x128xf32> to vector<2x128xf32>
      %134 = vector.shape_cast %131 : vector<2x128xf32> to vector<1x2x128xf32>
      tpu.vector_store %arg10[%c4_95, %c0_96, %c0_97], %134 {strides = array<i32>} : memref<8x2x128xf32, #tpu.memory_space<vmem>>, vector<1x2x128xf32>,
      %c5 = arith.constant 5 : index
      %c0_98 = arith.constant 0 : index
      %c0_99 = arith.constant 0 : index
      %135 = vector.load %arg9[%c5, %c0_98, %c0_99] : memref<8x2x128xf32, #tpu.memory_space<vmem>>, vector<1x2x128xf32>
      %136 = vector.shape_cast %135 : vector<1x2x128xf32> to vector<2x128xf32>
      %cst_100 = arith.constant 0.000000e+00 : f32
      %137 = vector.broadcast %cst_100 : f32 to vector<2x128xf32>
      %138 = arith.maximumf %136, %137 : vector<2x128xf32>
      %c5_101 = arith.constant 5 : index
      %c0_102 = arith.constant 0 : index
      %c0_103 = arith.constant 0 : index
      %139 = vector.load %arg9[%c5_101, %c0_102, %c0_103] : memref<8x2x128xf32, #tpu.memory_space<vmem>>, vector<1x2x128xf32>
      %140 = vector.shape_cast %139 : vector<1x2x128xf32> to vector<2x128xf32>
      %141 = vector.shape_cast %138 : vector<2x128xf32> to vector<1x2x128xf32>
      tpu.vector_store %arg9[%c5_101, %c0_102, %c0_103], %141 {strides = array<i32>} : memref<8x2x128xf32, #tpu.memory_space<vmem>>, vector<1x2x128xf32>,
      %c0_104 = arith.constant 0 : index
      %c0_105 = arith.constant 0 : index
      %142 = vector.load %arg7[%c0_104, %c0_105] : memref<128x128xf32, #tpu.memory_space<vmem>>, vector<128x128xf32>
      %cst_106 = arith.constant dense<0.000000e+00> : vector<2x128xf32>
      %143 = tpu.matmul %138, %142, %cst_106 {dimension_numbers = #tpu.dot_dimension_numbers<[1], [0], [0], [1], [0, 0, 1, 1], [], []>} : vector<2x128xf32>, vector<128x128xf32>, vector<2x128xf32> -> vector<2x128xf32>
      %c0_107 = arith.constant 0 : index
      %c0_108 = arith.constant 0 : index
      %144 = vector.load %arg8[%c0_107, %c0_108] : memref<1x128xf32, #tpu.memory_space<vmem>>, vector<1x128xf32>
      %145 = vector.broadcast %144 : vector<1x128xf32> to vector<2x128xf32>
      %146 = arith.addf %143, %145 : vector<2x128xf32>
      %c5_109 = arith.constant 5 : index
      %c0_110 = arith.constant 0 : index
      %c0_111 = arith.constant 0 : index
      %147 = vector.load %arg10[%c5_109, %c0_110, %c0_111] : memref<8x2x128xf32, #tpu.memory_space<vmem>>, vector<1x2x128xf32>
      %148 = vector.shape_cast %147 : vector<1x2x128xf32> to vector<2x128xf32>
      %149 = vector.shape_cast %146 : vector<2x128xf32> to vector<1x2x128xf32>
      tpu.vector_store %arg10[%c5_109, %c0_110, %c0_111], %149 {strides = array<i32>} : memref<8x2x128xf32, #tpu.memory_space<vmem>>, vector<1x2x128xf32>,
      %c6 = arith.constant 6 : index
      %c0_112 = arith.constant 0 : index
      %c0_113 = arith.constant 0 : index
      %150 = vector.load %arg9[%c6, %c0_112, %c0_113] : memref<8x2x128xf32, #tpu.memory_space<vmem>>, vector<1x2x128xf32>
      %151 = vector.shape_cast %150 : vector<1x2x128xf32> to vector<2x128xf32>
      %cst_114 = arith.constant 0.000000e+00 : f32
      %152 = vector.broadcast %cst_114 : f32 to vector<2x128xf32>
      %153 = arith.maximumf %151, %152 : vector<2x128xf32>
      %c6_115 = arith.constant 6 : index
      %c0_116 = arith.constant 0 : index
      %c0_117 = arith.constant 0 : index
      %154 = vector.load %arg9[%c6_115, %c0_116, %c0_117] : memref<8x2x128xf32, #tpu.memory_space<vmem>>, vector<1x2x128xf32>
      %155 = vector.shape_cast %154 : vector<1x2x128xf32> to vector<2x128xf32>
      %156 = vector.shape_cast %153 : vector<2x128xf32> to vector<1x2x128xf32>
      tpu.vector_store %arg9[%c6_115, %c0_116, %c0_117], %156 {strides = array<i32>} : memref<8x2x128xf32, #tpu.memory_space<vmem>>, vector<1x2x128xf32>,
      %c0_118 = arith.constant 0 : index
      %c0_119 = arith.constant 0 : index
      %157 = vector.load %arg7[%c0_118, %c0_119] : memref<128x128xf32, #tpu.memory_space<vmem>>, vector<128x128xf32>
      %cst_120 = arith.constant dense<0.000000e+00> : vector<2x128xf32>
      %158 = tpu.matmul %153, %157, %cst_120 {dimension_numbers = #tpu.dot_dimension_numbers<[1], [0], [0], [1], [0, 0, 1, 1], [], []>} : vector<2x128xf32>, vector<128x128xf32>, vector<2x128xf32> -> vector<2x128xf32>
      %c0_121 = arith.constant 0 : index
      %c0_122 = arith.constant 0 : index
      %159 = vector.load %arg8[%c0_121, %c0_122] : memref<1x128xf32, #tpu.memory_space<vmem>>, vector<1x128xf32>
      %160 = vector.broadcast %159 : vector<1x128xf32> to vector<2x128xf32>
      %161 = arith.addf %158, %160 : vector<2x128xf32>
      %c6_123 = arith.constant 6 : index
      %c0_124 = arith.constant 0 : index
      %c0_125 = arith.constant 0 : index
      %162 = vector.load %arg10[%c6_123, %c0_124, %c0_125] : memref<8x2x128xf32, #tpu.memory_space<vmem>>, vector<1x2x128xf32>
      %163 = vector.shape_cast %162 : vector<1x2x128xf32> to vector<2x128xf32>
      %164 = vector.shape_cast %161 : vector<2x128xf32> to vector<1x2x128xf32>
      tpu.vector_store %arg10[%c6_123, %c0_124, %c0_125], %164 {strides = array<i32>} : memref<8x2x128xf32, #tpu.memory_space<vmem>>, vector<1x2x128xf32>,
      %c7 = arith.constant 7 : index
      %c0_126 = arith.constant 0 : index
      %c0_127 = arith.constant 0 : index
      %165 = vector.load %arg9[%c7, %c0_126, %c0_127] : memref<8x2x128xf32, #tpu.memory_space<vmem>>, vector<1x2x128xf32>
      %166 = vector.shape_cast %165 : vector<1x2x128xf32> to vector<2x128xf32>
      %cst_128 = arith.constant 0.000000e+00 : f32
      %167 = vector.broadcast %cst_128 : f32 to vector<2x128xf32>
      %168 = arith.maximumf %166, %167 : vector<2x128xf32>
      %c7_129 = arith.constant 7 : index
      %c0_130 = arith.constant 0 : index
      %c0_131 = arith.constant 0 : index
      %169 = vector.load %arg9[%c7_129, %c0_130, %c0_131] : memref<8x2x128xf32, #tpu.memory_space<vmem>>, vector<1x2x128xf32>
      %170 = vector.shape_cast %169 : vector<1x2x128xf32> to vector<2x128xf32>
      %171 = vector.shape_cast %168 : vector<2x128xf32> to vector<1x2x128xf32>
      tpu.vector_store %arg9[%c7_129, %c0_130, %c0_131], %171 {strides = array<i32>} : memref<8x2x128xf32, #tpu.memory_space<vmem>>, vector<1x2x128xf32>,
      %c0_132 = arith.constant 0 : index
      %c0_133 = arith.constant 0 : index
      %172 = vector.load %arg7[%c0_132, %c0_133] : memref<128x128xf32, #tpu.memory_space<vmem>>, vector<128x128xf32>
      %cst_134 = arith.constant dense<0.000000e+00> : vector<2x128xf32>
      %173 = tpu.matmul %168, %172, %cst_134 {dimension_numbers = #tpu.dot_dimension_numbers<[1], [0], [0], [1], [0, 0, 1, 1], [], []>} : vector<2x128xf32>, vector<128x128xf32>, vector<2x128xf32> -> vector<2x128xf32>
      %c0_135 = arith.constant 0 : index
      %c0_136 = arith.constant 0 : index
      %174 = vector.load %arg8[%c0_135, %c0_136] : memref<1x128xf32, #tpu.memory_space<vmem>>, vector<1x128xf32>
      %175 = vector.broadcast %174 : vector<1x128xf32> to vector<2x128xf32>
      %176 = arith.addf %173, %175 : vector<2x128xf32>
      %c7_137 = arith.constant 7 : index
      %c0_138 = arith.constant 0 : index
      %c0_139 = arith.constant 0 : index
      %177 = vector.load %arg10[%c7_137, %c0_138, %c0_139] : memref<8x2x128xf32, #tpu.memory_space<vmem>>, vector<1x2x128xf32>
      %178 = vector.shape_cast %177 : vector<1x2x128xf32> to vector<2x128xf32>
      %179 = vector.shape_cast %176 : vector<2x128xf32> to vector<1x2x128xf32>
      tpu.vector_store %arg10[%c7_137, %c0_138, %c0_139], %179 {strides = array<i32>} : memref<8x2x128xf32, #tpu.memory_space<vmem>>, vector<1x2x128xf32>,
    } else {
    }
    return
  }
  func.func @transform_0(%arg0: i32) -> (i32, i32, i32) {
    %c0_i32 = arith.constant 0 : i32
    %c0_i32_0 = arith.constant 0 : i32
    %c0_i32_1 = arith.constant 0 : i32
    return %arg0, %c0_i32, %c0_i32_0 : i32, i32, i32
  }
  func.func @transform_1(%arg0: i32) -> (i32, i32, i32) {
    %c7_i32 = arith.constant 7 : i32
    %0 = arith.subi %c7_i32, %arg0 : i32
    %c0_i32 = arith.constant 0 : i32
    %c0_i32_0 = arith.constant 0 : i32
    %c0_i32_1 = arith.constant 0 : i32
    return %0, %c0_i32, %c0_i32_0 : i32, i32, i32
  }
  func.func @transform_2(%arg0: i32) -> (i32, i32) {
    %c0_i32 = arith.constant 0 : i32
    %c0_i32_0 = arith.constant 0 : i32
    %c0_i32_1 = arith.constant 0 : i32
    return %c0_i32, %c0_i32_0 : i32, i32
  }
  func.func @transform_3(%arg0: i32) -> (i32, i32) {
    %c0_i32 = arith.constant 0 : i32
    %c0_i32_0 = arith.constant 0 : i32
    %c0_i32_1 = arith.constant 0 : i32
    return %c0_i32, %c0_i32_0 : i32, i32
  }
  func.func @transform_4(%arg0: i32) -> (i32, i32) {
    %c0_i32 = arith.constant 0 : i32
    %c0_i32_0 = arith.constant 0 : i32
    %c0_i32_1 = arith.constant 0 : i32
    return %c0_i32, %c0_i32_0 : i32, i32
  }
  func.func @transform_5(%arg0: i32) -> (i32, i32) {
    %c0_i32 = arith.constant 0 : i32
    %c0_i32_0 = arith.constant 0 : i32
    %c0_i32_1 = arith.constant 0 : i32
    return %c0_i32, %c0_i32_0 : i32, i32
  }
  func.func @transform_6(%arg0: i32) -> (i32, i32) {
    %c0_i32 = arith.constant 0 : i32
    %c0_i32_0 = arith.constant 0 : i32
    %c0_i32_1 = arith.constant 0 : i32
    return %c0_i32, %c0_i32_0 : i32, i32
  }
  func.func @transform_7(%arg0: i32) -> (i32, i32) {
    %c0_i32 = arith.constant 0 : i32
    %c0_i32_0 = arith.constant 0 : i32
    %c0_i32_1 = arith.constant 0 : i32
    return %c0_i32, %c0_i32_0 : i32, i32
  }
  func.func @transform_8(%arg0: i32) -> (i32, i32, i32) {
    %c0_i32 = arith.constant 0 : i32
    %c0_i32_0 = arith.constant 0 : i32
    %c0_i32_1 = arith.constant 0 : i32
    %c0_i32_2 = arith.constant 0 : i32
    return %c0_i32, %c0_i32_0, %c0_i32_1 : i32, i32, i32
  }
  func.func @transform_9(%arg0: i32) -> (i32, i32, i32) {
    %c0_i32 = arith.constant 0 : i32
    %c0_i32_0 = arith.constant 0 : i32
    %c0_i32_1 = arith.constant 0 : i32
    %c0_i32_2 = arith.constant 0 : i32
    return %c0_i32, %c0_i32_0, %c0_i32_1 : i32, i32, i32
  }
}

</mosaic_0001>

<llo_original>
// kernel: tpu_custom_call.1
$region0: #{tpu_custom_call.1}
  #allocation0 [shape = 'u32[]', space=smem, size = 0x4, offset = 0x4, fixed_abs, tag = 'smem constant byte address 0x4 - core index']
  #allocation1 [shape = 'u32[144,128]{1,0:T(1,128)}', space=vmem, size = 0x12000, scoped, tag = 'internal scratch']
  #allocation2 [shape = 'f32[2,128]{1,0:T(2,128)}', space=vmem, size = 0x400, scoped, tag = 'scratch operand']
  %s0 = inlined_call_operand.hbm [shape: f32[8,2,32], index: 0, kind: input, shape index: {}]
  %s1 = inlined_call_operand.hbm [shape: f32[8,2,32], index: 1, kind: input, shape index: {}]
  %s2 = inlined_call_operand.hbm [shape: f32[64,384], index: 2, kind: input, shape index: {}]
  %s3 = inlined_call_operand.vmem [shape: f32[1,384], index: 3, kind: input, shape index: {}]
  %s4 = inlined_call_operand.hbm [shape: f32[128,384], index: 4, kind: input, shape index: {}]
  %s5 = inlined_call_operand.vmem [shape: f32[1,384], index: 5, kind: input, shape index: {}]
  %s6 = inlined_call_operand.hbm [shape: f32[128,128], index: 6, kind: input, shape index: {}]
  %s7 = inlined_call_operand.vmem [shape: f32[1,128], index: 7, kind: input, shape index: {}]
  %s8 = inlined_call_operand.hbm [shape: f32[8,2,128], index: 8, kind: output, shape index: {0}]
  %s9 = inlined_call_operand.hbm [shape: f32[8,2,128], index: 9, kind: output, shape index: {1}]
  %10 = xla_tuple %s8, %s9
  %s11 = sld [smem:[#allocation0]]
  $region101: #{tpu_custom_call.1} parent=0
    _
  %s13 = ssub.s32 1, %s11
  %s14 = scalar_select 0, %s13, %s11
  $region1: #{tpu_custom_call.1} parent=0
    #allocation3 [shape = 'u8[2048]{0}', space=vmem, size = 0x800, scoped, tag = 'input window, operand 0']
    #allocation4 [shape = 's32[2]{0}', space=sflag, size = 0x8, scoped, tag = 'scoped memory for tpu_custom_call.1']
    #allocation5 [shape = 's32[2]{0}', space=sflag, size = 0x8, scoped, tag = 'scoped memory for tpu_custom_call.1']
    #allocation6 [shape = 'u8[2048]{0}', space=vmem, size = 0x800, scoped, tag = 'input window, operand 1']
    #allocation7 [shape = 's32[2]{0}', space=sflag, size = 0x8, scoped, tag = 'scoped memory for tpu_custom_call.1']
    #allocation8 [shape = 'u8[98304]{0}', space=vmem, size = 0x18000, scoped, tag = 'input window, operand 2, single buffered']
    #allocation9 [shape = 'u8[196608]{0}', space=vmem, size = 0x30000, scoped, tag = 'input window, operand 4, single buffered']
    #allocation10 [shape = 's32[1]{0}', space=sflag, size = 0x4, scoped, tag = 'scoped memory for tpu_custom_call.1']
    #allocation11 [shape = 'u8[65536]{0}', space=vmem, size = 0x10000, scoped, tag = 'input window, operand 6, single buffered']
    #allocation12 [shape = 'u8[8192]{0}', space=vmem, size = 0x2000, scoped, tag = 'output window, operand 0, single buffered']
    #allocation13 [shape = 'u8[8192]{0}', space=vmem, size = 0x2000, scoped, tag = 'output window, operand 1, single buffered']
    #allocation14 [shape = 's32[1]{0}', space=sflag, size = 0x4, scoped, tag = 'scoped memory for tpu_custom_call.1']
    %15 = vsyncpa [#allocation4], 0
    %s16 = scalar_lea.sflag [#allocation4], 1
    %17 = vsyncpa %s16, 0
    %18 = vsyncpa [#allocation7], 0
    %s19 = scalar_lea.sflag [#allocation7], 1
    %20 = vsyncpa %s19, 0
    %21 = vsyncpa [#allocation10], 0
    %22 = vsyncpa [#allocation5], 0
    %23 = vsyncpa [#allocation14], 0
    loop: start=0, step=1, limit=10
    $region2: #{tpu_custom_call.1} parent=1 // loop_pre_header
      _
    $region3: #{tpu_custom_call.1} parent=1 // loop_header
      %s25 = sphi 0, %s29
      %p26 = scmp.ge.s32.totalorder %s25, 10
      %s35 = sphi 0, %s37
      %s38 = sphi 0, %s35
      %s39 = sphi 0, %s38
      %s55 = sphi 0, %s39
      %s63 = sphi 0, %s65
      %s66 = sphi 0, %s63
      %s67 = sphi 0, %s66
      %s83 = sphi 0, %s67
      %s87 = sphi 0, %s87
      %s89 = sphi 0, %s87
      %s90 = sphi 0, %s89
      %s104 = sphi 0, %s90
      %s108 = sphi 0, %s108
      %s110 = sphi 0, %s108
      %s111 = sphi 0, %s110
      %s125 = sphi 0, %s111
      %s129 = sphi 0, %s129
      %s131 = sphi 0, %s129
      %s132 = sphi 0, %s131
      %s146 = sphi 0, %s132
      %s150 = sphi 0, %s150
      %s152 = sphi 0, %s150
      %s153 = sphi 0, %s152
      %s167 = sphi 0, %s153
      %s171 = sphi 0, %s171
      %s173 = sphi 0, %s171
      %s174 = sphi 0, %s173
      %s188 = sphi 0, %s174
      %s192 = sphi 0, %s192
      %s194 = sphi 0, %s192
      %s195 = sphi 0, %s194
      %s209 = sphi 0, %s195
      %s213 = sphi 0, %s213
      %s215 = sphi 0, %s213
      %s216 = sphi 0, %s215
      %s230 = sphi 0, %s216
      %s234 = sphi 0, %s234
      %s236 = sphi 0, %s234
      %s237 = sphi 0, %s236
      %s251 = sphi 0, %s237
    $region4: #{tpu_custom_call.1} parent=1 // loop_header_branch
      %28 = sbr.rel (%p26) target = $region8
    $region5: #{tpu_custom_call.1} parent=1 // loop_body
      %s30 = ssub.s32 %s25, 1
      %s31 = ssub.s32 %s25, 2
      %s32 = sadd.s32 %s25, 1
      %s33 = ssub.s32 %s25, %s32
      %p34 = scmp.eq.s32.totalorder %s33, 0
      %s36 = sadd.s32 %s35, 1
      %s37 = scalar_select %p34, %s35, %s36
      %p40 = pneg %p34
      %p41 = scmp.eq.s32.totalorder %s25, 7
      %p42 = por %p40, %p41
      %p43 = scmp.ne.s32.totalorder %s35, %s38
      %p44 = scmp.eq.s32.totalorder %s25, 0
      %p45 = por %p43, %p44
      %p46 = scmp.ne.s32.totalorder %s35, %s38
      %p47 = scmp.eq.s32.totalorder %s30, 7
      %p48 = por %p46, %p47
      %p49 = scmp.ne.s32.totalorder %s38, %s39
      %p50 = scmp.eq.s32.totalorder %s30, 0
      %p51 = por %p49, %p50
      %p52 = scmp.ne.s32.totalorder %s38, %s39
      %p53 = scmp.eq.s32.totalorder %s31, 7
      %p54 = por %p52, %p53
      %p56 = scmp.ne.s32.totalorder %s39, %s55
      %p57 = scmp.eq.s32.totalorder %s31, 0
      %p58 = por %p56, %p57
      %s59 = ssub.s32 7, %s25
      %s60 = ssub.s32 7, %s32
      %s61 = ssub.s32 %s59, %s60
      %p62 = scmp.eq.s32.totalorder %s61, 0
      %s64 = sadd.s32 %s63, 1
      %s65 = scalar_select %p62, %s63, %s64
      %p68 = pneg %p62
      %p69 = scmp.eq.s32.totalorder %s25, 7
      %p70 = por %p68, %p69
      %p71 = scmp.ne.s32.totalorder %s63, %s66
      %p72 = scmp.eq.s32.totalorder %s25, 0
      %p73 = por %p71, %p72
      %p74 = scmp.ne.s32.totalorder %s63, %s66
      %p75 = scmp.eq.s32.totalorder %s30, 7
      %p76 = por %p74, %p75
      %p77 = scmp.ne.s32.totalorder %s66, %s67
      %p78 = scmp.eq.s32.totalorder %s30, 0
      %p79 = por %p77, %p78
      %p80 = scmp.ne.s32.totalorder %s66, %s67
      %p81 = scmp.eq.s32.totalorder %s31, 7
      %p82 = por %p80, %p81
      %p84 = scmp.ne.s32.totalorder %s67, %s83
      %p85 = scmp.eq.s32.totalorder %s31, 0
      %p86 = por %p84, %p85
      %s88 = sadd.s32 %s87, 1
      %p91 = scmp.eq.s32.totalorder %s25, 7
      %p92 = scmp.ne.s32.totalorder %s87, %s89
      %p93 = scmp.eq.s32.totalorder %s25, 0
      %p94 = por %p92, %p93
      %p95 = scmp.ne.s32.totalorder %s87, %s89
      %p96 = scmp.eq.s32.totalorder %s30, 7
      %p97 = por %p95, %p96
      %p98 = scmp.ne.s32.totalorder %s89, %s90
      %p99 = scmp.eq.s32.totalorder %s30, 0
      %p100 = por %p98, %p99
      %p101 = scmp.ne.s32.totalorder %s89, %s90
      %p102 = scmp.eq.s32.totalorder %s31, 7
      %p103 = por %p101, %p102
      %p105 = scmp.ne.s32.totalorder %s90, %s104
      %p106 = scmp.eq.s32.totalorder %s31, 0
      %p107 = por %p105, %p106
      %s109 = sadd.s32 %s108, 1
      %p112 = scmp.eq.s32.totalorder %s25, 7
      %p113 = scmp.ne.s32.totalorder %s108, %s110
      %p114 = scmp.eq.s32.totalorder %s25, 0
      %p115 = por %p113, %p114
      %p116 = scmp.ne.s32.totalorder %s108, %s110
      %p117 = scmp.eq.s32.totalorder %s30, 7
      %p118 = por %p116, %p117
      %p119 = scmp.ne.s32.totalorder %s110, %s111
      %p120 = scmp.eq.s32.totalorder %s30, 0
      %p121 = por %p119, %p120
      %p122 = scmp.ne.s32.totalorder %s110, %s111
      %p123 = scmp.eq.s32.totalorder %s31, 7
      %p124 = por %p122, %p123
      %p126 = scmp.ne.s32.totalorder %s111, %s125
      %p127 = scmp.eq.s32.totalorder %s31, 0
      %p128 = por %p126, %p127
      %s130 = sadd.s32 %s129, 1
      %p133 = scmp.eq.s32.totalorder %s25, 7
      %p134 = scmp.ne.s32.totalorder %s129, %s131
      %p135 = scmp.eq.s32.totalorder %s25, 0
      %p136 = por %p134, %p135
      %p137 = scmp.ne.s32.totalorder %s129, %s131
      %p138 = scmp.eq.s32.totalorder %s30, 7
      %p139 = por %p137, %p138
      %p140 = scmp.ne.s32.totalorder %s131, %s132
      %p141 = scmp.eq.s32.totalorder %s30, 0
      %p142 = por %p140, %p141
      %p143 = scmp.ne.s32.totalorder %s131, %s132
      %p144 = scmp.eq.s32.totalorder %s31, 7
      %p145 = por %p143, %p144
      %p147 = scmp.ne.s32.totalorder %s132, %s146
      %p148 = scmp.eq.s32.totalorder %s31, 0
      %p149 = por %p147, %p148
      %s151 = sadd.s32 %s150, 1
      %p154 = scmp.eq.s32.totalorder %s25, 7
      %p155 = scmp.ne.s32.totalorder %s150, %s152
      %p156 = scmp.eq.s32.totalorder %s25, 0
      %p157 = por %p155, %p156
      %p158 = scmp.ne.s32.totalorder %s150, %s152
      %p159 = scmp.eq.s32.totalorder %s30, 7
      %p160 = por %p158, %p159
      %p161 = scmp.ne.s32.totalorder %s152, %s153
      %p162 = scmp.eq.s32.totalorder %s30, 0
      %p163 = por %p161, %p162
      %p164 = scmp.ne.s32.totalorder %s152, %s153
      %p165 = scmp.eq.s32.totalorder %s31, 7
      %p166 = por %p164, %p165
      %p168 = scmp.ne.s32.totalorder %s153, %s167
      %p169 = scmp.eq.s32.totalorder %s31, 0
      %p170 = por %p168, %p169
      %s172 = sadd.s32 %s171, 1
      %p175 = scmp.eq.s32.totalorder %s25, 7
      %p176 = scmp.ne.s32.totalorder %s171, %s173
      %p177 = scmp.eq.s32.totalorder %s25, 0
      %p178 = por %p176, %p177
      %p179 = scmp.ne.s32.totalorder %s171, %s173
      %p180 = scmp.eq.s32.totalorder %s30, 7
      %p181 = por %p179, %p180
      %p182 = scmp.ne.s32.totalorder %s173, %s174
      %p183 = scmp.eq.s32.totalorder %s30, 0
      %p184 = por %p182, %p183
      %p185 = scmp.ne.s32.totalorder %s173, %s174
      %p186 = scmp.eq.s32.totalorder %s31, 7
      %p187 = por %p185, %p186
      %p189 = scmp.ne.s32.totalorder %s174, %s188
      %p190 = scmp.eq.s32.totalorder %s31, 0
      %p191 = por %p189, %p190
      %s193 = sadd.s32 %s192, 1
      %p196 = scmp.eq.s32.totalorder %s25, 7
      %p197 = scmp.ne.s32.totalorder %s192, %s194
      %p198 = scmp.eq.s32.totalorder %s25, 0
      %p199 = por %p197, %p198
      %p200 = scmp.ne.s32.totalorder %s192, %s194
      %p201 = scmp.eq.s32.totalorder %s30, 7
      %p202 = por %p200, %p201
      %p203 = scmp.ne.s32.totalorder %s194, %s195
      %p204 = scmp.eq.s32.totalorder %s30, 0
      %p205 = por %p203, %p204
      %p206 = scmp.ne.s32.totalorder %s194, %s195
      %p207 = scmp.eq.s32.totalorder %s31, 7
      %p208 = por %p206, %p207
      %p210 = scmp.ne.s32.totalorder %s195, %s209
      %p211 = scmp.eq.s32.totalorder %s31, 0
      %p212 = por %p210, %p211
      %s214 = sadd.s32 %s213, 1
      %p217 = scmp.eq.s32.totalorder %s25, 7
      %p218 = scmp.ne.s32.totalorder %s213, %s215
      %p219 = scmp.eq.s32.totalorder %s25, 0
      %p220 = por %p218, %p219
      %p221 = scmp.ne.s32.totalorder %s213, %s215
      %p222 = scmp.eq.s32.totalorder %s30, 7
      %p223 = por %p221, %p222
      %p224 = scmp.ne.s32.totalorder %s215, %s216
      %p225 = scmp.eq.s32.totalorder %s30, 0
      %p226 = por %p224, %p225
      %p227 = scmp.ne.s32.totalorder %s215, %s216
      %p228 = scmp.eq.s32.totalorder %s31, 7
      %p229 = por %p227, %p228
      %p231 = scmp.ne.s32.totalorder %s216, %s230
      %p232 = scmp.eq.s32.totalorder %s31, 0
      %p233 = por %p231, %p232
      %s235 = sadd.s32 %s234, 1
      %p238 = scmp.eq.s32.totalorder %s25, 7
      %p239 = scmp.ne.s32.totalorder %s234, %s236
      %p240 = scmp.eq.s32.totalorder %s25, 0
      %p241 = por %p239, %p240
      %p242 = scmp.ne.s32.totalorder %s234, %s236
      %p243 = scmp.eq.s32.totalorder %s30, 7
      %p244 = por %p242, %p243
      %p245 = scmp.ne.s32.totalorder %s236, %s237
      %p246 = scmp.eq.s32.totalorder %s30, 0
      %p247 = por %p245, %p246
      %p248 = scmp.ne.s32.totalorder %s236, %s237
      %p249 = scmp.eq.s32.totalorder %s31, 7
      %p250 = por %p248, %p249
      %p252 = scmp.ne.s32.totalorder %s237, %s251
      %p253 = scmp.eq.s32.totalorder %s31, 0
      %p254 = por %p252, %p253
      %p255 = scmp.le.s32.totalorder 1, %s25
      %p256 = scmp.lt.s32.totalorder %s25, 9
      %p257 = pnand %p255, %p256
      %p258 = pneg %p257
      // Predicated region
      $region9: #{tpu_custom_call.1} parent=5 // pred_check
        _
      $region10: #{tpu_custom_call.1} parent=5 // pred_check_branch
        %260 = sbr.rel (%p257) target = $region12
      $region11: #{tpu_custom_call.1} parent=5 // pred_region
        %s261 = ssub.s32 %s25, 1
        // Predicated region
        $region13: #{tpu_custom_call.1} parent=11 // pred_check
          %p262 = pneg %p100
        $region14: #{tpu_custom_call.1} parent=11 // pred_check_branch
          %264 = sbr.rel (%p262) target = $region16
        $region15: #{tpu_custom_call.1} parent=11 // pred_region
          %s266 = ssub.s32 3072, 3072
          %267 = vsyncadd [#allocation7], %s266
          %s268 = sshll.u32 [#allocation8], 4
          %s269 = int_to_ptr.vmem [resolvable:$true] %s268
          %274 = dma.hbm_to_vmem [thread:$0]  %s2, 3072, %s269, [#allocation7], 384, 384, 24
        $region16: #{tpu_custom_call.1} parent=11 // pred_fallthru
          _
        // Predicated region
        $region17: #{tpu_custom_call.1} parent=11 // pred_check
          %p275 = pneg %p121
        $region18: #{tpu_custom_call.1} parent=11 // pred_check_branch
          %277 = sbr.rel (%p275) target = $region20
        $region19: #{tpu_custom_call.1} parent=11 // pred_region
          _
        $region20: #{tpu_custom_call.1} parent=11 // pred_fallthru
          _
        // Predicated region
        $region21: #{tpu_custom_call.1} parent=11 // pred_check
          %p278 = pneg %p142
        $region22: #{tpu_custom_call.1} parent=11 // pred_check_branch
          %280 = sbr.rel (%p278) target = $region24
        $region23: #{tpu_custom_call.1} parent=11 // pred_region
          %s282 = ssub.s32 6144, 6144
          %283 = vsyncadd [#allocation10], %s282
          %s284 = sshll.u32 [#allocation9], 4
          %s285 = int_to_ptr.vmem [resolvable:$true] %s284
          %290 = dma.hbm_to_vmem [thread:$0]  %s4, 6144, %s285, [#allocation10], 384, 384, 24
        $region24: #{tpu_custom_call.1} parent=11 // pred_fallthru
          _
        // Predicated region
        $region25: #{tpu_custom_call.1} parent=11 // pred_check
          %p291 = pneg %p163
        $region26: #{tpu_custom_call.1} parent=11 // pred_check_branch
          %293 = sbr.rel (%p291) target = $region28
        $region27: #{tpu_custom_call.1} parent=11 // pred_region
          _
        $region28: #{tpu_custom_call.1} parent=11 // pred_fallthru
          _
        // Predicated region
        $region29: #{tpu_custom_call.1} parent=11 // pred_check
          %p294 = pneg %p184
        $region30: #{tpu_custom_call.1} parent=11 // pred_check_branch
          %296 = sbr.rel (%p294) target = $region32
        $region31: #{tpu_custom_call.1} parent=11 // pred_region
          %s298 = ssub.s32 2048, 2048
          %299 = vsyncadd [#allocation10], %s298
          %s300 = sshll.u32 [#allocation11], 4
          %s301 = int_to_ptr.vmem [resolvable:$true] %s300
          %306 = dma.hbm_to_vmem [thread:$0]  %s6, 2048, %s301, [#allocation10], 128, 128, 8
        $region32: #{tpu_custom_call.1} parent=11 // pred_fallthru
          _
        // Predicated region
        $region33: #{tpu_custom_call.1} parent=11 // pred_check
          %p307 = pneg %p205
        $region34: #{tpu_custom_call.1} parent=11 // pred_check_branch
          %309 = sbr.rel (%p307) target = $region36
        $region35: #{tpu_custom_call.1} parent=11 // pred_region
          _
        $region36: #{tpu_custom_call.1} parent=11 // pred_fallthru
          _
      $region12: #{tpu_custom_call.1} parent=5 // pred_fallthru
        _
      %p310 = scmp.lt.s32.totalorder %s25, 8
      // Predicated region
      $region37: #{tpu_custom_call.1} parent=5 // pred_check
        %p311 = pneg %p310
      $region38: #{tpu_custom_call.1} parent=5 // pred_check_branch
        %313 = sbr.rel (%p311) target = $region40
      $region39: #{tpu_custom_call.1} parent=5 // pred_region
        // Predicated region
        $region41: #{tpu_custom_call.1} parent=39 // pred_check
          %p314 = pneg %p45
        $region42: #{tpu_custom_call.1} parent=39 // pred_check_branch
          %316 = sbr.rel (%p314) target = $region44
        $region43: #{tpu_custom_call.1} parent=39 // pred_region
          %s317 = sand.u32 %s35, 1
          %s318 = scalar_lea.sflag [#allocation4], %s317
          %s319 = sand.u32 %s35, 1
          %s320 = smul.addr %s319, 2
          %s321 = scalar_lea.vmem [#allocation3], %s320
          %s323 = ssub.s32 32, 32
          %324 = vsyncadd %s318, %s323
          %s325 = smul.addr %s25, 32
          %s326 = scalar_lea.hbm %s0, %s325
          %s328 = sshll.u32 %s321, 4
          %s329 = int_to_ptr.vmem [resolvable:$true] %s328
          %331 = dma.hbm_to_vmem [thread:$0]  %s326, 32, %s329, %s318
        $region44: #{tpu_custom_call.1} parent=39 // pred_fallthru
          _
        // Predicated region
        $region45: #{tpu_custom_call.1} parent=39 // pred_check
          %p332 = pneg %p73
        $region46: #{tpu_custom_call.1} parent=39 // pred_check_branch
          %334 = sbr.rel (%p332) target = $region48
        $region47: #{tpu_custom_call.1} parent=39 // pred_region
          %s335 = sand.u32 %s25, 1
          %s336 = scalar_lea.sflag [#allocation7], %s335
          %s337 = sand.u32 %s63, 1
          %s338 = smul.addr %s337, 2
          %s339 = scalar_lea.vmem [#allocation6], %s338
          %s340 = ssub.s32 7, %s25
          %s342 = ssub.s32 32, 32
          %343 = vsyncadd %s336, %s342
          %s344 = smul.addr %s340, 32
          %s345 = scalar_lea.hbm %s1, %s344
          %s347 = sshll.u32 %s339, 4
          %s348 = int_to_ptr.vmem [resolvable:$true] %s347
          %350 = dma.hbm_to_vmem [thread:$0]  %s345, 32, %s348, %s336
        $region48: #{tpu_custom_call.1} parent=39 // pred_fallthru
          _
      $region40: #{tpu_custom_call.1} parent=5 // pred_fallthru
        _
      %p351 = scmp.le.s32.totalorder 1, %s25
      %p352 = scmp.lt.s32.totalorder %s25, 9
      %p353 = pnand %p351, %p352
      %p354 = pneg %p353
      // Predicated region
      $region49: #{tpu_custom_call.1} parent=5 // pred_check
        _
      $region50: #{tpu_custom_call.1} parent=5 // pred_check_branch
        %356 = sbr.rel (%p353) target = $region52
      $region51: #{tpu_custom_call.1} parent=5 // pred_region
        %s357 = ssub.s32 %s25, 1
        %s358 = sand.u32 %s38, 1
        %s359 = scalar_lea.sflag [#allocation4], %s358
        %s360 = sand.u32 %s38, 1
        %s361 = smul.addr %s360, 2
        %s362 = scalar_lea.vmem [#allocation3], %s361
        // Predicated region
        $region53: #{tpu_custom_call.1} parent=51 // pred_check
          %p363 = pneg %p51
        $region54: #{tpu_custom_call.1} parent=51 // pred_check_branch
          %365 = sbr.rel (%p363) target = $region56
        $region55: #{tpu_custom_call.1} parent=51 // pred_region
          %366 = dma.done %s359, 32
        $region56: #{tpu_custom_call.1} parent=51 // pred_fallthru
          _
        %s367 = sand.u32 %s30, 1
        %s368 = scalar_lea.sflag [#allocation7], %s367
        %s369 = sand.u32 %s66, 1
        %s370 = smul.addr %s369, 2
        %s371 = scalar_lea.vmem [#allocation6], %s370
        // Predicated region
        $region57: #{tpu_custom_call.1} parent=51 // pred_check
          %p372 = pneg %p79
        $region58: #{tpu_custom_call.1} parent=51 // pred_check_branch
          %374 = sbr.rel (%p372) target = $region60
        $region59: #{tpu_custom_call.1} parent=51 // pred_region
          %375 = dma.done %s368, 32
        $region60: #{tpu_custom_call.1} parent=51 // pred_fallthru
          _
        // Predicated region
        $region61: #{tpu_custom_call.1} parent=51 // pred_check
          %p376 = pneg %p100
        $region62: #{tpu_custom_call.1} parent=51 // pred_check_branch
          %378 = sbr.rel (%p376) target = $region64
        $region63: #{tpu_custom_call.1} parent=51 // pred_region
          %379 = dma.done [#allocation7], 3072
        $region64: #{tpu_custom_call.1} parent=51 // pred_fallthru
          _
        // Predicated region
        $region65: #{tpu_custom_call.1} parent=51 // pred_check
          %p380 = pneg %p142
        $region66: #{tpu_custom_call.1} parent=51 // pred_check_branch
          %382 = sbr.rel (%p380) target = $region68
        $region67: #{tpu_custom_call.1} parent=51 // pred_region
          %383 = dma.done [#allocation10], 6144
        $region68: #{tpu_custom_call.1} parent=51 // pred_fallthru
          _
        // Predicated region
        $region69: #{tpu_custom_call.1} parent=51 // pred_check
          %p384 = pneg %p184
        $region70: #{tpu_custom_call.1} parent=51 // pred_check_branch
          %386 = sbr.rel (%p384) target = $region72
        $region71: #{tpu_custom_call.1} parent=51 // pred_region
          %387 = dma.done [#allocation10], 2048
        $region72: #{tpu_custom_call.1} parent=51 // pred_fallthru
          _
        %s388 = sand.u32 %s38, 1
        %s389 = scalar_lea.sflag [#allocation4], %s388
        %s390 = sand.u32 %s38, 1
        %s391 = smul.addr %s390, 2
        %s392 = scalar_lea.vmem [#allocation3], %s391
        %p393 = pneg %p51
        %p394 = pneg %p48
        %s395 = sand.u32 %s30, 1
        %s396 = scalar_lea.sflag [#allocation7], %s395
        %s397 = sand.u32 %s66, 1
        %s398 = smul.addr %s397, 2
        %s399 = scalar_lea.vmem [#allocation6], %s398
        %p400 = pneg %p79
        %p401 = pneg %p76
        %p402 = pneg %p100
        %p403 = pneg %p97
        %p404 = pneg %p121
        %p405 = pneg %p118
        %p406 = pneg %p142
        %p407 = pneg %p139
        %p408 = pneg %p163
        %p409 = pneg %p160
        %p410 = pneg %p184
        %p411 = pneg %p181
        %p412 = pneg %p205
        %p413 = pneg %p202
        %p414 = pneg %p226
        %p415 = pneg %p223
        %p416 = pneg %p247
        %p417 = pneg %p244
        %s418 = ssub.s32 7, %s30
        %p419 = scmp.eq.s32.totalorder %s30, 0
        // Predicated region
        $region73: #{tpu_custom_call.1} parent=51 // pred_check
          %p420 = pneg %p419
        $region74: #{tpu_custom_call.1} parent=51 // pred_check_branch
          %422 = sbr.rel (%p420) target = $region76
        $region75: #{tpu_custom_call.1} parent=51 // pred_region
          %423 = vst [vmem:[#allocation2] sm:$0x3] 0.0
        $region76: #{tpu_custom_call.1} parent=51 // pred_fallthru
          _
        %v424 = vld [vmem:[%s362] sm:$0x3]
        %v425 = vld [vmem:[%s371] sm:$0x3]
        %427 = vrot.lane.b32.xlu0 %v425, 32
        %v428 = vpop.permute.xlu0 %427
        %vm430 = vcmask 261120
        %v431 = vsel %vm430, %v424, %v428
        %v432 = vld [vmem:[#allocation2] sm:$0x3]
        %v433 = vld [vmem:[#allocation8] sm:$0xff]
        %v434 = vld [vmem:[#allocation8 + $0x8] sm:$0xff]
        %v435 = vld [vmem:[#allocation8 + $0x10] sm:$0xff]
        %v436 = vld [vmem:[#allocation8 + $0x18] sm:$0xff]
        %v437 = vld [vmem:[#allocation8 + $0x20] sm:$0xff]
        %v438 = vld [vmem:[#allocation8 + $0x28] sm:$0xff]
        %v439 = vld [vmem:[#allocation8 + $0x30] sm:$0xff]
        %v440 = vld [vmem:[#allocation8 + $0x38] sm:$0xff]
        %v441 = vld [vmem:[#allocation8 + $0x40] sm:$0xff]
        %v442 = vld [vmem:[#allocation8 + $0x48] sm:$0xff]
        %v443 = vld [vmem:[#allocation8 + $0x50] sm:$0xff]
        %v444 = vld [vmem:[#allocation8 + $0x58] sm:$0xff]
        %v445 = vld [vmem:[#allocation8 + $0x60] sm:$0xff]
        %v446 = vld [vmem:[#allocation8 + $0x68] sm:$0xff]
        %v447 = vld [vmem:[#allocation8 + $0x70] sm:$0xff]
        %v448 = vld [vmem:[#allocation8 + $0x78] sm:$0xff]
        %v449 = vld [vmem:[#allocation8 + $0x80] sm:$0xff]
        %v450 = vld [vmem:[#allocation8 + $0x88] sm:$0xff]
        %v451 = vld [vmem:[#allocation8 + $0x90] sm:$0xff]
        %v452 = vld [vmem:[#allocation8 + $0x98] sm:$0xff]
        %v453 = vld [vmem:[#allocation8 + $0xa0] sm:$0xff]
        %v454 = vld [vmem:[#allocation8 + $0xa8] sm:$0xff]
        %v455 = vld [vmem:[#allocation8 + $0xb0] sm:$0xff]
        %v456 = vld [vmem:[#allocation8 + $0xb8] sm:$0xff]
        %v457 = vld [vmem:[%s3] sm:$0x7]
        %v459 = vlaneseq
        %v460 = vshrl.u32 %v459, 7
        %v461 = vsub.s32 0, %v460
        %v462 = vrot.slane %v457, %v461
        %v463 = vlaneseq
        %v464 = vshrl.u32 %v463, 7
        %v465 = vsub.s32 1, %v464
        %v466 = vrot.slane %v457, %v465
        %v467 = vlaneseq
        %v468 = vshrl.u32 %v467, 7
        %v469 = vsub.s32 2, %v468
        %v470 = vrot.slane %v457, %v469
        %vm474 = vcmask 523264
        %v476 = vsel %vm474, %v431, 0
        %478 = vmatprep.subr.mxu0 %v434
        %479 = vmatpush1.msra.mxu0 %v433
        %480 = vmatprep.subr.mxu0 %v437
        %481 = vmatpush1.msra.mxu0 %v436
        %482 = vmatprep.subr.mxu0 %v440
        %483 = vmatpush1.msra.mxu0 %v439
        %484 = vmatprep.subr.mxu0 %v443
        %485 = vmatpush1.msra.mxu0 %v442
        %486 = vmatprep.subr.mxu0 %v446
        %487 = vmatpush1.msra.mxu0 %v445
        %488 = vmatprep.subr.mxu0 %v449
        %489 = vmatpush1.msra.mxu0 %v448
        %490 = vmatprep.subr.mxu0 %v452
        %491 = vmatpush1.msra.mxu0 %v451
        %492 = vmatprep.subr.mxu0 %v455
        %493 = vmatpush1.msra.mxu0 %v454
        %494 = vmatprep.subr.mxu0 0.0
        %495 = vmatpush1.msra.mxu0 0.0
        %496 = vmatprep.subr.mxu0 0.0
        %497 = vmatpush1.msra.mxu0 0.0
        %498 = vmatprep.subr.mxu0 0.0
        %499 = vmatpush1.msra.mxu0 0.0
        %500 = vmatprep.subr.mxu0 0.0
        %501 = vmatpush1.msra.mxu0 0.0
        %502 = vmatprep.subr.mxu0 0.0
        %503 = vmatpush1.msra.mxu0 0.0
        %504 = vmatprep.subr.mxu0 0.0
        %505 = vmatpush1.msra.mxu0 0.0
        %506 = vmatprep.subr.mxu0 0.0
        %507 = vmatpush1.msra.mxu0 0.0
        %508 = vmatprep.subr.mxu0 0.0
        %509 = vmatpush1.msra.mxu0 0.0
        %510 = vmatprep.subr.mxu0 0.0
        %511 = vmatpush1.msra.mxu0 0.0
        %512 = vmatprep.subr.mxu0 0.0
        %513 = vmatpush1.msra.mxu0 0.0
        %514 = vmatprep.subr.mxu0 0.0
        %515 = vmatpush1.msra.mxu0 0.0
        %516 = vmatprep.subr.mxu0 0.0
        %517 = vmatpush1.msra.mxu0 0.0
        %518 = vmatprep.subr.mxu0 0.0
        %519 = vmatpush1.msra.mxu0 0.0
        %520 = vmatprep.subr.mxu0 0.0
        %521 = vmatpush1.msra.mxu0 0.0
        %522 = vmatprep.subr.mxu0 0.0
        %523 = vmatpush1.msra.mxu0 0.0
        %524 = vmatprep.subr.mxu0 0.0
        %525 = vmatpush1.msra.mxu0 0.0
        %526 = vmatprep.subr.mxu0 0.0
        %527 = vmatpush1.msra.mxu0 0.0
        %528 = vmatprep.subr.mxu0 0.0
        %529 = vmatpush1.msra.mxu0 0.0
        %530 = vmatprep.subr.mxu0 0.0
        %531 = vmatpush1.msra.mxu0 0.0
        %532 = vmatprep.subr.mxu0 0.0
        %533 = vmatpush1.msra.mxu0 0.0
        %534 = vmatprep.subr.mxu0 0.0
        %535 = vmatpush1.msra.mxu0 0.0
        %536 = vmatprep.subr.mxu0 0.0
        %537 = vmatpush1.msra.mxu0 0.0
        %538 = vmatprep.subr.mxu0 0.0
        %539 = vmatpush1.msra.mxu0 0.0
        %540 = vmatprep.subr.mxu0 0.0
        %541 = vmatpush1.msra.mxu0 0.0
        %542 = vmatprep.mubr.f32.mxu0 0.0
        %543 = vmatmul.mubr.f32.gmra.mrb[0].mxu0 %v476
        %v544 = vpop.f32.mrb[0].mxu0
        %v545 = vadd.f32 %v462, %v544
        %v546 = vpop.f32.mrb[0].mxu0
        %v547 = vadd.f32 %v466, %v546
        %548 = vdwg.mxu0
        %549 = vmatprep.subr.mxu0 0.0
        %550 = vmatpush1.msra.mxu0 %v435
        %551 = vmatprep.subr.mxu0 0.0
        %552 = vmatpush1.msra.mxu0 %v438
        %553 = vmatprep.subr.mxu0 0.0
        %554 = vmatpush1.msra.mxu0 %v441
        %555 = vmatprep.subr.mxu0 0.0
        %556 = vmatpush1.msra.mxu0 %v444
        %557 = vmatprep.subr.mxu0 0.0
        %558 = vmatpush1.msra.mxu0 %v447
        %559 = vmatprep.subr.mxu0 0.0
        %560 = vmatpush1.msra.mxu0 %v450
        %561 = vmatprep.subr.mxu0 0.0
        %562 = vmatpush1.msra.mxu0 %v453
        %563 = vmatprep.subr.mxu0 0.0
        %564 = vmatpush1.msra.mxu0 %v456
        %565 = vmatprep.subr.mxu0 0.0
        %566 = vmatpush1.msra.mxu0 0.0
        %567 = vmatprep.subr.mxu0 0.0
        %568 = vmatpush1.msra.mxu0 0.0
        %569 = vmatprep.subr.mxu0 0.0
        %570 = vmatpush1.msra.mxu0 0.0
        %571 = vmatprep.subr.mxu0 0.0
        %572 = vmatpush1.msra.mxu0 0.0
        %573 = vmatprep.subr.mxu0 0.0
        %574 = vmatpush1.msra.mxu0 0.0
        %575 = vmatprep.subr.mxu0 0.0
        %576 = vmatpush1.msra.mxu0 0.0
        %577 = vmatprep.subr.mxu0 0.0
        %578 = vmatpush1.msra.mxu0 0.0
        %579 = vmatprep.subr.mxu0 0.0
        %580 = vmatpush1.msra.mxu0 0.0
        %581 = vmatprep.subr.mxu0 0.0
        %582 = vmatpush1.msra.mxu0 0.0
        %583 = vmatprep.subr.mxu0 0.0
        %584 = vmatpush1.msra.mxu0 0.0
        %585 = vmatprep.subr.mxu0 0.0
        %586 = vmatpush1.msra.mxu0 0.0
        %587 = vmatprep.subr.mxu0 0.0
        %588 = vmatpush1.msra.mxu0 0.0
        %589 = vmatprep.subr.mxu0 0.0
        %590 = vmatpush1.msra.mxu0 0.0
        %591 = vmatprep.subr.mxu0 0.0
        %592 = vmatpush1.msra.mxu0 0.0
        %593 = vmatprep.subr.mxu0 0.0
        %594 = vmatpush1.msra.mxu0 0.0
        %595 = vmatprep.subr.mxu0 0.0
        %596 = vmatpush1.msra.mxu0 0.0
        %597 = vmatprep.subr.mxu0 0.0
        %598 = vmatpush1.msra.mxu0 0.0
        %599 = vmatprep.subr.mxu0 0.0
        %600 = vmatpush1.msra.mxu0 0.0
        %601 = vmatprep.subr.mxu0 0.0
        %602 = vmatpush1.msra.mxu0 0.0
        %603 = vmatprep.subr.mxu0 0.0
        %604 = vmatpush1.msra.mxu0 0.0
        %605 = vmatprep.subr.mxu0 0.0
        %606 = vmatpush1.msra.mxu0 0.0
        %607 = vmatprep.subr.mxu0 0.0
        %608 = vmatpush1.msra.mxu0 0.0
        %609 = vmatprep.subr.mxu0 0.0
        %610 = vmatpush1.msra.mxu0 0.0
        %611 = vmatprep.subr.mxu0 0.0
        %612 = vmatpush1.msra.mxu0 0.0
        %613 = vmatprep.mubr.f32.mxu0 0.0
        %614 = vmatmul.mubr.f32.gmra.mrb[0].mxu0 %v476
        %v615 = vpop.f32.mrb[0].mxu0
        %v616 = vadd.f32 %v470, %v615
        %v617 = vpop.f32.mrb[0].mxu0
        %618 = vdwg.mxu0
        %v619 = vld [vmem:[#allocation9] sm:$0xff]
        %v620 = vld [vmem:[#allocation9 + $0x8] sm:$0xff]
        %v621 = vld [vmem:[#allocation9 + $0x10] sm:$0xff]
        %v622 = vld [vmem:[#allocation9 + $0x18] sm:$0xff]
        %v623 = vld [vmem:[#allocation9 + $0x20] sm:$0xff]
        %v624 = vld [vmem:[#allocation9 + $0x28] sm:$0xff]
        %v625 = vld [vmem:[#allocation9 + $0x30] sm:$0xff]
        %v626 = vld [vmem:[#allocation9 + $0x38] sm:$0xff]
        %v627 = vld [vmem:[#allocation9 + $0x40] sm:$0xff]
        %v628 = vld [vmem:[#allocation9 + $0x48] sm:$0xff]
        %v629 = vld [vmem:[#allocation9 + $0x50] sm:$0xff]
        %v630 = vld [vmem:[#allocation9 + $0x58] sm:$0xff]
        %v631 = vld [vmem:[#allocation9 + $0x60] sm:$0xff]
        %v632 = vld [vmem:[#allocation9 + $0x68] sm:$0xff]
        %v633 = vld [vmem:[#allocation9 + $0x70] sm:$0xff]
        %v634 = vld [vmem:[#allocation9 + $0x78] sm:$0xff]
        %v635 = vld [vmem:[#allocation9 + $0x80] sm:$0xff]
        %v636 = vld [vmem:[#allocation9 + $0x88] sm:$0xff]
        %v637 = vld [vmem:[#allocation9 + $0x90] sm:$0xff]
        %v638 = vld [vmem:[#allocation9 + $0x98] sm:$0xff]
        %v639 = vld [vmem:[#allocation9 + $0xa0] sm:$0xff]
        %v640 = vld [vmem:[#allocation9 + $0xa8] sm:$0xff]
        %v641 = vld [vmem:[#allocation9 + $0xb0] sm:$0xff]
        %v642 = vld [vmem:[#allocation9 + $0xb8] sm:$0xff]
        %v643 = vld [vmem:[#allocation9 + $0xc0] sm:$0xff]
        %v644 = vld [vmem:[#allocation9 + $0xc8] sm:$0xff]
        %v645 = vld [vmem:[#allocation9 + $0xd0] sm:$0xff]
        %v646 = vld [vmem:[#allocation9 + $0xd8] sm:$0xff]
        %v647 = vld [vmem:[#allocation9 + $0xe0] sm:$0xff]
        %v648 = vld [vmem:[#allocation9 + $0xe8] sm:$0xff]
        %v649 = vld [vmem:[#allocation9 + $0xf0] sm:$0xff]
        %v650 = vld [vmem:[#allocation9 + $0xf8] sm:$0xff]
        %v651 = vld [vmem:[#allocation9 + $0x100] sm:$0xff]
        %v652 = vld [vmem:[#allocation9 + $0x108] sm:$0xff]
        %v653 = vld [vmem:[#allocation9 + $0x110] sm:$0xff]
        %v654 = vld [vmem:[#allocation9 + $0x118] sm:$0xff]
        %v655 = vld [vmem:[#allocation9 + $0x120] sm:$0xff]
        %v656 = vld [vmem:[#allocation9 + $0x128] sm:$0xff]
        %v657 = vld [vmem:[#allocation9 + $0x130] sm:$0xff]
        %v658 = vld [vmem:[#allocation9 + $0x138] sm:$0xff]
        %v659 = vld [vmem:[#allocation9 + $0x140] sm:$0xff]
        %v660 = vld [vmem:[#allocation9 + $0x148] sm:$0xff]
        %v661 = vld [vmem:[#allocation9 + $0x150] sm:$0xff]
        %v662 = vld [vmem:[#allocation9 + $0x158] sm:$0xff]
        %v663 = vld [vmem:[#allocation9 + $0x160] sm:$0xff]
        %v664 = vld [vmem:[#allocation9 + $0x168] sm:$0xff]
        %v665 = vld [vmem:[#allocation9 + $0x170] sm:$0xff]
        %v666 = vld [vmem:[#allocation9 + $0x178] sm:$0xff]
        %v667 = vld [vmem:[%s5] sm:$0x7]
        %v669 = vlaneseq
        %v670 = vshrl.u32 %v669, 7
        %v671 = vsub.s32 0, %v670
        %v672 = vrot.slane %v667, %v671
        %v673 = vlaneseq
        %v674 = vshrl.u32 %v673, 7
        %v675 = vsub.s32 1, %v674
        %v676 = vrot.slane %v667, %v675
        %v677 = vlaneseq
        %v678 = vshrl.u32 %v677, 7
        %v679 = vsub.s32 2, %v678
        %v680 = vrot.slane %v667, %v679
        %684 = vmatprep.subr.mxu0 %v620
        %685 = vmatpush1.msra.mxu0 %v619
        %686 = vmatprep.subr.mxu0 %v623
        %687 = vmatpush1.msra.mxu0 %v622
        %688 = vmatprep.subr.mxu0 %v626
        %689 = vmatpush1.msra.mxu0 %v625
        %690 = vmatprep.subr.mxu0 %v629
        %691 = vmatpush1.msra.mxu0 %v628
        %692 = vmatprep.subr.mxu0 %v632
        %693 = vmatpush1.msra.mxu0 %v631
        %694 = vmatprep.subr.mxu0 %v635
        %695 = vmatpush1.msra.mxu0 %v634
        %696 = vmatprep.subr.mxu0 %v638
        %697 = vmatpush1.msra.mxu0 %v637
        %698 = vmatprep.subr.mxu0 %v641
        %699 = vmatpush1.msra.mxu0 %v640
        %700 = vmatprep.subr.mxu0 %v644
        %701 = vmatpush1.msra.mxu0 %v643
        %702 = vmatprep.subr.mxu0 %v647
        %703 = vmatpush1.msra.mxu0 %v646
        %704 = vmatprep.subr.mxu0 %v650
        %705 = vmatpush1.msra.mxu0 %v649
        %706 = vmatprep.subr.mxu0 %v653
        %707 = vmatpush1.msra.mxu0 %v652
        %708 = vmatprep.subr.mxu0 %v656
        %709 = vmatpush1.msra.mxu0 %v655
        %710 = vmatprep.subr.mxu0 %v659
        %711 = vmatpush1.msra.mxu0 %v658
        %712 = vmatprep.subr.mxu0 %v662
        %713 = vmatpush1.msra.mxu0 %v661
        %714 = vmatprep.subr.mxu0 %v665
        %715 = vmatpush1.msra.mxu0 %v664
        %716 = vmatprep.subr.mxu0 0.0
        %717 = vmatpush1.msra.mxu0 0.0
        %718 = vmatprep.subr.mxu0 0.0
        %719 = vmatpush1.msra.mxu0 0.0
        %720 = vmatprep.subr.mxu0 0.0
        %721 = vmatpush1.msra.mxu0 0.0
        %722 = vmatprep.subr.mxu0 0.0
        %723 = vmatpush1.msra.mxu0 0.0
        %724 = vmatprep.subr.mxu0 0.0
        %725 = vmatpush1.msra.mxu0 0.0
        %726 = vmatprep.subr.mxu0 0.0
        %727 = vmatpush1.msra.mxu0 0.0
        %728 = vmatprep.subr.mxu0 0.0
        %729 = vmatpush1.msra.mxu0 0.0
        %730 = vmatprep.subr.mxu0 0.0
        %731 = vmatpush1.msra.mxu0 0.0
        %732 = vmatprep.subr.mxu0 0.0
        %733 = vmatpush1.msra.mxu0 0.0
        %734 = vmatprep.subr.mxu0 0.0
        %735 = vmatpush1.msra.mxu0 0.0
        %736 = vmatprep.subr.mxu0 0.0
        %737 = vmatpush1.msra.mxu0 0.0
        %738 = vmatprep.subr.mxu0 0.0
        %739 = vmatpush1.msra.mxu0 0.0
        %740 = vmatprep.subr.mxu0 0.0
        %741 = vmatpush1.msra.mxu0 0.0
        %742 = vmatprep.subr.mxu0 0.0
        %743 = vmatpush1.msra.mxu0 0.0
        %744 = vmatprep.subr.mxu0 0.0
        %745 = vmatpush1.msra.mxu0 0.0
        %746 = vmatprep.subr.mxu0 0.0
        %747 = vmatpush1.msra.mxu0 0.0
        %748 = vmatprep.mubr.f32.mxu0 0.0
        %749 = vmatmul.mubr.f32.gmra.mrb[0].mxu0 %v432
        %v750 = vpop.f32.mrb[0].mxu0
        %v751 = vadd.f32 %v672, %v750
        %v752 = vpop.f32.mrb[0].mxu0
        %v753 = vadd.f32 %v676, %v752
        %754 = vdwg.mxu0
        %755 = vmatprep.subr.mxu0 0.0
        %756 = vmatpush1.msra.mxu0 %v621
        %757 = vmatprep.subr.mxu0 0.0
        %758 = vmatpush1.msra.mxu0 %v624
        %759 = vmatprep.subr.mxu0 0.0
        %760 = vmatpush1.msra.mxu0 %v627
        %761 = vmatprep.subr.mxu0 0.0
        %762 = vmatpush1.msra.mxu0 %v630
        %763 = vmatprep.subr.mxu0 0.0
        %764 = vmatpush1.msra.mxu0 %v633
        %765 = vmatprep.subr.mxu0 0.0
        %766 = vmatpush1.msra.mxu0 %v636
        %767 = vmatprep.subr.mxu0 0.0
        %768 = vmatpush1.msra.mxu0 %v639
        %769 = vmatprep.subr.mxu0 0.0
        %770 = vmatpush1.msra.mxu0 %v642
        %771 = vmatprep.subr.mxu0 0.0
        %772 = vmatpush1.msra.mxu0 %v645
        %773 = vmatprep.subr.mxu0 0.0
        %774 = vmatpush1.msra.mxu0 %v648
        %775 = vmatprep.subr.mxu0 0.0
        %776 = vmatpush1.msra.mxu0 %v651
        %777 = vmatprep.subr.mxu0 0.0
        %778 = vmatpush1.msra.mxu0 %v654
        %779 = vmatprep.subr.mxu0 0.0
        %780 = vmatpush1.msra.mxu0 %v657
        %781 = vmatprep.subr.mxu0 0.0
        %782 = vmatpush1.msra.mxu0 %v660
        %783 = vmatprep.subr.mxu0 0.0
        %784 = vmatpush1.msra.mxu0 %v663
        %785 = vmatprep.subr.mxu0 0.0
        %786 = vmatpush1.msra.mxu0 %v666
        %787 = vmatprep.subr.mxu0 0.0
        %788 = vmatpush1.msra.mxu0 0.0
        %789 = vmatprep.subr.mxu0 0.0
        %790 = vmatpush1.msra.mxu0 0.0
        %791 = vmatprep.subr.mxu0 0.0
        %792 = vmatpush1.msra.mxu0 0.0
        %793 = vmatprep.subr.mxu0 0.0
        %794 = vmatpush1.msra.mxu0 0.0
        %795 = vmatprep.subr.mxu0 0.0
        %796 = vmatpush1.msra.mxu0 0.0
        %797 = vmatprep.subr.mxu0 0.0
        %798 = vmatpush1.msra.mxu0 0.0
        %799 = vmatprep.subr.mxu0 0.0
        %800 = vmatpush1.msra.mxu0 0.0
        %801 = vmatprep.subr.mxu0 0.0
        %802 = vmatpush1.msra.mxu0 0.0
        %803 = vmatprep.subr.mxu0 0.0
        %804 = vmatpush1.msra.mxu0 0.0
        %805 = vmatprep.subr.mxu0 0.0
        %806 = vmatpush1.msra.mxu0 0.0
        %807 = vmatprep.subr.mxu0 0.0
        %808 = vmatpush1.msra.mxu0 0.0
        %809 = vmatprep.subr.mxu0 0.0
        %810 = vmatpush1.msra.mxu0 0.0
        %811 = vmatprep.subr.mxu0 0.0
        %812 = vmatpush1.msra.mxu0 0.0
        %813 = vmatprep.subr.mxu0 0.0
        %814 = vmatpush1.msra.mxu0 0.0
        %815 = vmatprep.subr.mxu0 0.0
        %816 = vmatpush1.msra.mxu0 0.0
        %817 = vmatprep.subr.mxu0 0.0
        %818 = vmatpush1.msra.mxu0 0.0
        %819 = vmatprep.mubr.f32.mxu0 0.0
        %820 = vmatmul.mubr.f32.gmra.mrb[0].mxu0 %v432
        %v821 = vpop.f32.mrb[0].mxu0
        %v822 = vadd.f32 %v680, %v821
        %v823 = vpop.f32.mrb[0].mxu0
        %824 = vdwg.mxu0
        %v825 = vadd.f32 %v545, %v751
        %v826 = vxor.u32 %v825, 2147483648
        %v827 = vmul.f32 %v826, 1.442695
        %v828 = vpow.pop %v827
        %v829 = vadd.f32 %v828, 1.0
        %v830 = vrcp.pop %v829
        %v831 = vmul.f32 1.0, %v830
        %v832 = vadd.f32 %v547, %v753
        %v833 = vxor.u32 %v832, 2147483648
        %v834 = vmul.f32 %v833, 1.442695
        %v835 = vpow.pop %v834
        %v836 = vadd.f32 %v835, 1.0
        %v837 = vrcp.pop %v836
        %v838 = vmul.f32 1.0, %v837
        %v839 = vmul.f32 %v831, %v822
        %v840 = vadd.f32 %v616, %v839
        %v841 = vtanh.pop %v840
        %v842 = vsub.f32 1.0, %v838
        %v843 = vmul.f32 %v842, %v841
        %v844 = vmul.f32 %v838, %v432
        %v845 = vadd.f32 %v843, %v844
        %846 = vst [vmem:[#allocation2] sm:$0x3] %v845
        %s847 = smul.u32 %s30, 2
        %s848 = scalar_lea.vmem [#allocation12], %s847
        %vm849 = vcmask 517120
        %850 = vst.msk [vmem:[%s848] sm:$0x3] %vm849, %v845
        %s851 = ssub.s32 7, %s30
        %s852 = smul.u32 %s851, 2
        %s853 = scalar_lea.vmem [#allocation12], %s852
        %vm854 = vcmask 1041920
        %855 = vst.msk [vmem:[%s853] sm:$0x3] %vm854, %v845
        %p856 = scmp.eq.s32.totalorder %s30, 7
        // Predicated region
        $region77: #{tpu_custom_call.1} parent=51 // pred_check
          %p857 = pneg %p856
        $region78: #{tpu_custom_call.1} parent=51 // pred_check_branch
          %859 = sbr.rel (%p857) target = $region80
        $region79: #{tpu_custom_call.1} parent=51 // pred_region
          %v860 = vld [vmem:[#allocation12] sm:$0x3]
          %v861 = vmax.f32 %v860, 0.0
          %862 = vst [vmem:[#allocation12] sm:$0x3] %v861
          %v863 = vld [vmem:[#allocation11] sm:$0xff]
          %v864 = vld [vmem:[#allocation11 + $0x8] sm:$0xff]
          %v865 = vld [vmem:[#allocation11 + $0x10] sm:$0xff]
          %v866 = vld [vmem:[#allocation11 + $0x18] sm:$0xff]
          %v867 = vld [vmem:[#allocation11 + $0x20] sm:$0xff]
          %v868 = vld [vmem:[#allocation11 + $0x28] sm:$0xff]
          %v869 = vld [vmem:[#allocation11 + $0x30] sm:$0xff]
          %v870 = vld [vmem:[#allocation11 + $0x38] sm:$0xff]
          %v871 = vld [vmem:[#allocation11 + $0x40] sm:$0xff]
          %v872 = vld [vmem:[#allocation11 + $0x48] sm:$0xff]
          %v873 = vld [vmem:[#allocation11 + $0x50] sm:$0xff]
          %v874 = vld [vmem:[#allocation11 + $0x58] sm:$0xff]
          %v875 = vld [vmem:[#allocation11 + $0x60] sm:$0xff]
          %v876 = vld [vmem:[#allocation11 + $0x68] sm:$0xff]
          %v877 = vld [vmem:[#allocation11 + $0x70] sm:$0xff]
          %v878 = vld [vmem:[#allocation11 + $0x78] sm:$0xff]
          %v879 = vld [vmem:[%s7] sm:$0x1]
          %v881 = vlaneseq
          %v882 = vshrl.u32 %v881, 7
          %v883 = vsub.s32 0, %v882
          %v884 = vrot.slane %v879, %v883
          %886 = vmatprep.subr.mxu0 0.0
          %887 = vmatpush1.msra.mxu0 %v863
          %888 = vmatprep.subr.mxu0 0.0
          %889 = vmatpush1.msra.mxu0 %v864
          %890 = vmatprep.subr.mxu0 0.0
          %891 = vmatpush1.msra.mxu0 %v865
          %892 = vmatprep.subr.mxu0 0.0
          %893 = vmatpush1.msra.mxu0 %v866
          %894 = vmatprep.subr.mxu0 0.0
          %895 = vmatpush1.msra.mxu0 %v867
          %896 = vmatprep.subr.mxu0 0.0
          %897 = vmatpush1.msra.mxu0 %v868
          %898 = vmatprep.subr.mxu0 0.0
          %899 = vmatpush1.msra.mxu0 %v869
          %900 = vmatprep.subr.mxu0 0.0
          %901 = vmatpush1.msra.mxu0 %v870
          %902 = vmatprep.subr.mxu0 0.0
          %903 = vmatpush1.msra.mxu0 %v871
          %904 = vmatprep.subr.mxu0 0.0
          %905 = vmatpush1.msra.mxu0 %v872
          %906 = vmatprep.subr.mxu0 0.0
          %907 = vmatpush1.msra.mxu0 %v873
          %908 = vmatprep.subr.mxu0 0.0
          %909 = vmatpush1.msra.mxu0 %v874
          %910 = vmatprep.subr.mxu0 0.0
          %911 = vmatpush1.msra.mxu0 %v875
          %912 = vmatprep.subr.mxu0 0.0
          %913 = vmatpush1.msra.mxu0 %v876
          %914 = vmatprep.subr.mxu0 0.0
          %915 = vmatpush1.msra.mxu0 %v877
          %916 = vmatprep.subr.mxu0 0.0
          %917 = vmatpush1.msra.mxu0 %v878
          %918 = vmatprep.subr.mxu0 0.0
          %919 = vmatpush1.msra.mxu0 0.0
          %920 = vmatprep.subr.mxu0 0.0
          %921 = vmatpush1.msra.mxu0 0.0
          %922 = vmatprep.subr.mxu0 0.0
          %923 = vmatpush1.msra.mxu0 0.0
          %924 = vmatprep.subr.mxu0 0.0
          %925 = vmatpush1.msra.mxu0 0.0
          %926 = vmatprep.subr.mxu0 0.0
          %927 = vmatpush1.msra.mxu0 0.0
          %928 = vmatprep.subr.mxu0 0.0
          %929 = vmatpush1.msra.mxu0 0.0
          %930 = vmatprep.subr.mxu0 0.0
          %931 = vmatpush1.msra.mxu0 0.0
          %932 = vmatprep.subr.mxu0 0.0
          %933 = vmatpush1.msra.mxu0 0.0
          %934 = vmatprep.subr.mxu0 0.0
          %935 = vmatpush1.msra.mxu0 0.0
          %936 = vmatprep.subr.mxu0 0.0
          %937 = vmatpush1.msra.mxu0 0.0
          %938 = vmatprep.subr.mxu0 0.0
          %939 = vmatpush1.msra.mxu0 0.0
          %940 = vmatprep.subr.mxu0 0.0
          %941 = vmatpush1.msra.mxu0 0.0
          %942 = vmatprep.subr.mxu0 0.0
          %943 = vmatpush1.msra.mxu0 0.0
          %944 = vmatprep.subr.mxu0 0.0
          %945 = vmatpush1.msra.mxu0 0.0
          %946 = vmatprep.subr.mxu0 0.0
          %947 = vmatpush1.msra.mxu0 0.0
          %948 = vmatprep.subr.mxu0 0.0
          %949 = vmatpush1.msra.mxu0 0.0
          %950 = vmatprep.mubr.f32.mxu0 0.0
          %951 = vmatmul.mubr.f32.gmra.mrb[0].mxu0 %v861
          %v952 = vpop.f32.mrb[0].mxu0
          %v953 = vadd.f32 %v884, %v952
          %v954 = vpop.f32.mrb[0].mxu0
          %955 = vdwg.mxu0
          %956 = vst [vmem:[#allocation13] sm:$0x3] %v953
          %s957 = scalar_lea.vmem [#allocation12], 2
          %v958 = vld [vmem:[%s957] sm:$0x3]
          %v959 = vmax.f32 %v958, 0.0
          %960 = vst [vmem:[%s957] sm:$0x3] %v959
          %v961 = vld [vmem:[#allocation11] sm:$0xff]
          %v962 = vld [vmem:[#allocation11 + $0x8] sm:$0xff]
          %v963 = vld [vmem:[#allocation11 + $0x10] sm:$0xff]
          %v964 = vld [vmem:[#allocation11 + $0x18] sm:$0xff]
          %v965 = vld [vmem:[#allocation11 + $0x20] sm:$0xff]
          %v966 = vld [vmem:[#allocation11 + $0x28] sm:$0xff]
          %v967 = vld [vmem:[#allocation11 + $0x30] sm:$0xff]
          %v968 = vld [vmem:[#allocation11 + $0x38] sm:$0xff]
          %v969 = vld [vmem:[#allocation11 + $0x40] sm:$0xff]
          %v970 = vld [vmem:[#allocation11 + $0x48] sm:$0xff]
          %v971 = vld [vmem:[#allocation11 + $0x50] sm:$0xff]
          %v972 = vld [vmem:[#allocation11 + $0x58] sm:$0xff]
          %v973 = vld [vmem:[#allocation11 + $0x60] sm:$0xff]
          %v974 = vld [vmem:[#allocation11 + $0x68] sm:$0xff]
          %v975 = vld [vmem:[#allocation11 + $0x70] sm:$0xff]
          %v976 = vld [vmem:[#allocation11 + $0x78] sm:$0xff]
          %v977 = vld [vmem:[%s7] sm:$0x1]
          %v979 = vlaneseq
          %v980 = vshrl.u32 %v979, 7
          %v981 = vsub.s32 0, %v980
          %v982 = vrot.slane %v977, %v981
          %984 = vmatprep.subr.mxu0 0.0
          %985 = vmatpush1.msra.mxu0 %v961
          %986 = vmatprep.subr.mxu0 0.0
          %987 = vmatpush1.msra.mxu0 %v962
          %988 = vmatprep.subr.mxu0 0.0
          %989 = vmatpush1.msra.mxu0 %v963
          %990 = vmatprep.subr.mxu0 0.0
          %991 = vmatpush1.msra.mxu0 %v964
          %992 = vmatprep.subr.mxu0 0.0
          %993 = vmatpush1.msra.mxu0 %v965
          %994 = vmatprep.subr.mxu0 0.0
          %995 = vmatpush1.msra.mxu0 %v966
          %996 = vmatprep.subr.mxu0 0.0
          %997 = vmatpush1.msra.mxu0 %v967
          %998 = vmatprep.subr.mxu0 0.0
          %999 = vmatpush1.msra.mxu0 %v968
          %1000 = vmatprep.subr.mxu0 0.0
          %1001 = vmatpush1.msra.mxu0 %v969
          %1002 = vmatprep.subr.mxu0 0.0
          %1003 = vmatpush1.msra.mxu0 %v970
          %1004 = vmatprep.subr.mxu0 0.0
          %1005 = vmatpush1.msra.mxu0 %v971
          %1006 = vmatprep.subr.mxu0 0.0
          %1007 = vmatpush1.msra.mxu0 %v972
          %1008 = vmatprep.subr.mxu0 0.0
          %1009 = vmatpush1.msra.mxu0 %v973
          %1010 = vmatprep.subr.mxu0 0.0
          %1011 = vmatpush1.msra.mxu0 %v974
          %1012 = vmatprep.subr.mxu0 0.0
          %1013 = vmatpush1.msra.mxu0 %v975
          %1014 = vmatprep.subr.mxu0 0.0
          %1015 = vmatpush1.msra.mxu0 %v976
          %1016 = vmatprep.subr.mxu0 0.0
          %1017 = vmatpush1.msra.mxu0 0.0
          %1018 = vmatprep.subr.mxu0 0.0
          %1019 = vmatpush1.msra.mxu0 0.0
          %1020 = vmatprep.subr.mxu0 0.0
          %1021 = vmatpush1.msra.mxu0 0.0
          %1022 = vmatprep.subr.mxu0 0.0
          %1023 = vmatpush1.msra.mxu0 0.0
          %1024 = vmatprep.subr.mxu0 0.0
          %1025 = vmatpush1.msra.mxu0 0.0
          %1026 = vmatprep.subr.mxu0 0.0
          %1027 = vmatpush1.msra.mxu0 0.0
          %1028 = vmatprep.subr.mxu0 0.0
          %1029 = vmatpush1.msra.mxu0 0.0
          %1030 = vmatprep.subr.mxu0 0.0
          %1031 = vmatpush1.msra.mxu0 0.0
          %1032 = vmatprep.subr.mxu0 0.0
          %1033 = vmatpush1.msra.mxu0 0.0
          %1034 = vmatprep.subr.mxu0 0.0
          %1035 = vmatpush1.msra.mxu0 0.0
          %1036 = vmatprep.subr.mxu0 0.0
          %1037 = vmatpush1.msra.mxu0 0.0
          %1038 = vmatprep.subr.mxu0 0.0
          %1039 = vmatpush1.msra.mxu0 0.0
          %1040 = vmatprep.subr.mxu0 0.0
          %1041 = vmatpush1.msra.mxu0 0.0
          %1042 = vmatprep.subr.mxu0 0.0
          %1043 = vmatpush1.msra.mxu0 0.0
          %1044 = vmatprep.subr.mxu0 0.0
          %1045 = vmatpush1.msra.mxu0 0.0
          %1046 = vmatprep.subr.mxu0 0.0
          %1047 = vmatpush1.msra.mxu0 0.0
          %1048 = vmatprep.mubr.f32.mxu0 0.0
          %1049 = vmatmul.mubr.f32.gmra.mrb[0].mxu0 %v959
          %v1050 = vpop.f32.mrb[0].mxu0
          %v1051 = vadd.f32 %v982, %v1050
          %v1052 = vpop.f32.mrb[0].mxu0
          %1053 = vdwg.mxu0
          %s1054 = scalar_lea.vmem [#allocation13], 2
          %1055 = vst [vmem:[%s1054] sm:$0x3] %v1051
          %s1056 = scalar_lea.vmem [#allocation12], 4
          %v1057 = vld [vmem:[%s1056] sm:$0x3]
          %v1058 = vmax.f32 %v1057, 0.0
          %1059 = vst [vmem:[%s1056] sm:$0x3] %v1058
          %v1060 = vld [vmem:[#allocation11] sm:$0xff]
          %v1061 = vld [vmem:[#allocation11 + $0x8] sm:$0xff]
          %v1062 = vld [vmem:[#allocation11 + $0x10] sm:$0xff]
          %v1063 = vld [vmem:[#allocation11 + $0x18] sm:$0xff]
          %v1064 = vld [vmem:[#allocation11 + $0x20] sm:$0xff]
          %v1065 = vld [vmem:[#allocation11 + $0x28] sm:$0xff]
          %v1066 = vld [vmem:[#allocation11 + $0x30] sm:$0xff]
          %v1067 = vld [vmem:[#allocation11 + $0x38] sm:$0xff]
          %v1068 = vld [vmem:[#allocation11 + $0x40] sm:$0xff]
          %v1069 = vld [vmem:[#allocation11 + $0x48] sm:$0xff]
          %v1070 = vld [vmem:[#allocation11 + $0x50] sm:$0xff]
          %v1071 = vld [vmem:[#allocation11 + $0x58] sm:$0xff]
          %v1072 = vld [vmem:[#allocation11 + $0x60] sm:$0xff]
          %v1073 = vld [vmem:[#allocation11 + $0x68] sm:$0xff]
          %v1074 = vld [vmem:[#allocation11 + $0x70] sm:$0xff]
          %v1075 = vld [vmem:[#allocation11 + $0x78] sm:$0xff]
          %v1076 = vld [vmem:[%s7] sm:$0x1]
          %v1078 = vlaneseq
          %v1079 = vshrl.u32 %v1078, 7
          %v1080 = vsub.s32 0, %v1079
          %v1081 = vrot.slane %v1076, %v1080
          %1083 = vmatprep.subr.mxu0 0.0
          %1084 = vmatpush1.msra.mxu0 %v1060
          %1085 = vmatprep.subr.mxu0 0.0
          %1086 = vmatpush1.msra.mxu0 %v1061
          %1087 = vmatprep.subr.mxu0 0.0
          %1088 = vmatpush1.msra.mxu0 %v1062
          %1089 = vmatprep.subr.mxu0 0.0
          %1090 = vmatpush1.msra.mxu0 %v1063
          %1091 = vmatprep.subr.mxu0 0.0
          %1092 = vmatpush1.msra.mxu0 %v1064
          %1093 = vmatprep.subr.mxu0 0.0
          %1094 = vmatpush1.msra.mxu0 %v1065
          %1095 = vmatprep.subr.mxu0 0.0
          %1096 = vmatpush1.msra.mxu0 %v1066
          %1097 = vmatprep.subr.mxu0 0.0
          %1098 = vmatpush1.msra.mxu0 %v1067
          %1099 = vmatprep.subr.mxu0 0.0
          %1100 = vmatpush1.msra.mxu0 %v1068
          %1101 = vmatprep.subr.mxu0 0.0
          %1102 = vmatpush1.msra.mxu0 %v1069
          %1103 = vmatprep.subr.mxu0 0.0
          %1104 = vmatpush1.msra.mxu0 %v1070
          %1105 = vmatprep.subr.mxu0 0.0
          %1106 = vmatpush1.msra.mxu0 %v1071
          %1107 = vmatprep.subr.mxu0 0.0
          %1108 = vmatpush1.msra.mxu0 %v1072
          %1109 = vmatprep.subr.mxu0 0.0
          %1110 = vmatpush1.msra.mxu0 %v1073
          %1111 = vmatprep.subr.mxu0 0.0
          %1112 = vmatpush1.msra.mxu0 %v1074
          %1113 = vmatprep.subr.mxu0 0.0
          %1114 = vmatpush1.msra.mxu0 %v1075
          %1115 = vmatprep.subr.mxu0 0.0
          %1116 = vmatpush1.msra.mxu0 0.0
          %1117 = vmatprep.subr.mxu0 0.0
          %1118 = vmatpush1.msra.mxu0 0.0
          %1119 = vmatprep.subr.mxu0 0.0
          %1120 = vmatpush1.msra.mxu0 0.0
          %1121 = vmatprep.subr.mxu0 0.0
          %1122 = vmatpush1.msra.mxu0 0.0
          %1123 = vmatprep.subr.mxu0 0.0
          %1124 = vmatpush1.msra.mxu0 0.0
          %1125 = vmatprep.subr.mxu0 0.0
          %1126 = vmatpush1.msra.mxu0 0.0
          %1127 = vmatprep.subr.mxu0 0.0
          %1128 = vmatpush1.msra.mxu0 0.0
          %1129 = vmatprep.subr.mxu0 0.0
          %1130 = vmatpush1.msra.mxu0 0.0
          %1131 = vmatprep.subr.mxu0 0.0
          %1132 = vmatpush1.msra.mxu0 0.0
          %1133 = vmatprep.subr.mxu0 0.0
          %1134 = vmatpush1.msra.mxu0 0.0
          %1135 = vmatprep.subr.mxu0 0.0
          %1136 = vmatpush1.msra.mxu0 0.0
          %1137 = vmatprep.subr.mxu0 0.0
          %1138 = vmatpush1.msra.mxu0 0.0
          %1139 = vmatprep.subr.mxu0 0.0
          %1140 = vmatpush1.msra.mxu0 0.0
          %1141 = vmatprep.subr.mxu0 0.0
          %1142 = vmatpush1.msra.mxu0 0.0
          %1143 = vmatprep.subr.mxu0 0.0
          %1144 = vmatpush1.msra.mxu0 0.0
          %1145 = vmatprep.subr.mxu0 0.0
          %1146 = vmatpush1.msra.mxu0 0.0
          %1147 = vmatprep.mubr.f32.mxu0 0.0
          %1148 = vmatmul.mubr.f32.gmra.mrb[0].mxu0 %v1058
          %v1149 = vpop.f32.mrb[0].mxu0
          %v1150 = vadd.f32 %v1081, %v1149
          %v1151 = vpop.f32.mrb[0].mxu0
          %1152 = vdwg.mxu0
          %s1153 = scalar_lea.vmem [#allocation13], 4
          %1154 = vst [vmem:[%s1153] sm:$0x3] %v1150
          %s1155 = scalar_lea.vmem [#allocation12], 6
          %v1156 = vld [vmem:[%s1155] sm:$0x3]
          %v1157 = vmax.f32 %v1156, 0.0
          %1158 = vst [vmem:[%s1155] sm:$0x3] %v1157
          %v1159 = vld [vmem:[#allocation11] sm:$0xff]
          %v1160 = vld [vmem:[#allocation11 + $0x8] sm:$0xff]
          %v1161 = vld [vmem:[#allocation11 + $0x10] sm:$0xff]
          %v1162 = vld [vmem:[#allocation11 + $0x18] sm:$0xff]
          %v1163 = vld [vmem:[#allocation11 + $0x20] sm:$0xff]
          %v1164 = vld [vmem:[#allocation11 + $0x28] sm:$0xff]
          %v1165 = vld [vmem:[#allocation11 + $0x30] sm:$0xff]
          %v1166 = vld [vmem:[#allocation11 + $0x38] sm:$0xff]
          %v1167 = vld [vmem:[#allocation11 + $0x40] sm:$0xff]
          %v1168 = vld [vmem:[#allocation11 + $0x48] sm:$0xff]
          %v1169 = vld [vmem:[#allocation11 + $0x50] sm:$0xff]
          %v1170 = vld [vmem:[#allocation11 + $0x58] sm:$0xff]
          %v1171 = vld [vmem:[#allocation11 + $0x60] sm:$0xff]
          %v1172 = vld [vmem:[#allocation11 + $0x68] sm:$0xff]
          %v1173 = vld [vmem:[#allocation11 + $0x70] sm:$0xff]
          %v1174 = vld [vmem:[#allocation11 + $0x78] sm:$0xff]
          %v1175 = vld [vmem:[%s7] sm:$0x1]
          %v1177 = vlaneseq
          %v1178 = vshrl.u32 %v1177, 7
          %v1179 = vsub.s32 0, %v1178
          %v1180 = vrot.slane %v1175, %v1179
          %1182 = vmatprep.subr.mxu0 0.0
          %1183 = vmatpush1.msra.mxu0 %v1159
          %1184 = vmatprep.subr.mxu0 0.0
          %1185 = vmatpush1.msra.mxu0 %v1160
          %1186 = vmatprep.subr.mxu0 0.0
          %1187 = vmatpush1.msra.mxu0 %v1161
          %1188 = vmatprep.subr.mxu0 0.0
          %1189 = vmatpush1.msra.mxu0 %v1162
          %1190 = vmatprep.subr.mxu0 0.0
          %1191 = vmatpush1.msra.mxu0 %v1163
          %1192 = vmatprep.subr.mxu0 0.0
          %1193 = vmatpush1.msra.mxu0 %v1164
          %1194 = vmatprep.subr.mxu0 0.0
          %1195 = vmatpush1.msra.mxu0 %v1165
          %1196 = vmatprep.subr.mxu0 0.0
          %1197 = vmatpush1.msra.mxu0 %v1166
          %1198 = vmatprep.subr.mxu0 0.0
          %1199 = vmatpush1.msra.mxu0 %v1167
          %1200 = vmatprep.subr.mxu0 0.0
          %1201 = vmatpush1.msra.mxu0 %v1168
          %1202 = vmatprep.subr.mxu0 0.0
          %1203 = vmatpush1.msra.mxu0 %v1169
          %1204 = vmatprep.subr.mxu0 0.0
          %1205 = vmatpush1.msra.mxu0 %v1170
          %1206 = vmatprep.subr.mxu0 0.0
          %1207 = vmatpush1.msra.mxu0 %v1171
          %1208 = vmatprep.subr.mxu0 0.0
          %1209 = vmatpush1.msra.mxu0 %v1172
          %1210 = vmatprep.subr.mxu0 0.0
          %1211 = vmatpush1.msra.mxu0 %v1173
          %1212 = vmatprep.subr.mxu0 0.0
          %1213 = vmatpush1.msra.mxu0 %v1174
          %1214 = vmatprep.subr.mxu0 0.0
          %1215 = vmatpush1.msra.mxu0 0.0
          %1216 = vmatprep.subr.mxu0 0.0
          %1217 = vmatpush1.msra.mxu0 0.0
          %1218 = vmatprep.subr.mxu0 0.0
          %1219 = vmatpush1.msra.mxu0 0.0
          %1220 = vmatprep.subr.mxu0 0.0
          %1221 = vmatpush1.msra.mxu0 0.0
          %1222 = vmatprep.subr.mxu0 0.0
          %1223 = vmatpush1.msra.mxu0 0.0
          %1224 = vmatprep.subr.mxu0 0.0
          %1225 = vmatpush1.msra.mxu0 0.0
          %1226 = vmatprep.subr.mxu0 0.0
          %1227 = vmatpush1.msra.mxu0 0.0
          %1228 = vmatprep.subr.mxu0 0.0
          %1229 = vmatpush1.msra.mxu0 0.0
          %1230 = vmatprep.subr.mxu0 0.0
          %1231 = vmatpush1.msra.mxu0 0.0
          %1232 = vmatprep.subr.mxu0 0.0
          %1233 = vmatpush1.msra.mxu0 0.0
          %1234 = vmatprep.subr.mxu0 0.0
          %1235 = vmatpush1.msra.mxu0 0.0
          %1236 = vmatprep.subr.mxu0 0.0
          %1237 = vmatpush1.msra.mxu0 0.0
          %1238 = vmatprep.subr.mxu0 0.0
          %1239 = vmatpush1.msra.mxu0 0.0
          %1240 = vmatprep.subr.mxu0 0.0
          %1241 = vmatpush1.msra.mxu0 0.0
          %1242 = vmatprep.subr.mxu0 0.0
          %1243 = vmatpush1.msra.mxu0 0.0
          %1244 = vmatprep.subr.mxu0 0.0
          %1245 = vmatpush1.msra.mxu0 0.0
          %1246 = vmatprep.mubr.f32.mxu0 0.0
          %1247 = vmatmul.mubr.f32.gmra.mrb[0].mxu0 %v1157
          %v1248 = vpop.f32.mrb[0].mxu0
          %v1249 = vadd.f32 %v1180, %v1248
          %v1250 = vpop.f32.mrb[0].mxu0
          %1251 = vdwg.mxu0
          %s1252 = scalar_lea.vmem [#allocation13], 6
          %1253 = vst [vmem:[%s1252] sm:$0x3] %v1249
          %s1254 = scalar_lea.vmem [#allocation12], 8
          %v1255 = vld [vmem:[%s1254] sm:$0x3]
          %v1256 = vmax.f32 %v1255, 0.0
          %1257 = vst [vmem:[%s1254] sm:$0x3] %v1256
          %v1258 = vld [vmem:[#allocation11] sm:$0xff]
          %v1259 = vld [vmem:[#allocation11 + $0x8] sm:$0xff]
          %v1260 = vld [vmem:[#allocation11 + $0x10] sm:$0xff]
          %v1261 = vld [vmem:[#allocation11 + $0x18] sm:$0xff]
          %v1262 = vld [vmem:[#allocation11 + $0x20] sm:$0xff]
          %v1263 = vld [vmem:[#allocation11 + $0x28] sm:$0xff]
          %v1264 = vld [vmem:[#allocation11 + $0x30] sm:$0xff]
          %v1265 = vld [vmem:[#allocation11 + $0x38] sm:$0xff]
          %v1266 = vld [vmem:[#allocation11 + $0x40] sm:$0xff]
          %v1267 = vld [vmem:[#allocation11 + $0x48] sm:$0xff]
          %v1268 = vld [vmem:[#allocation11 + $0x50] sm:$0xff]
          %v1269 = vld [vmem:[#allocation11 + $0x58] sm:$0xff]
          %v1270 = vld [vmem:[#allocation11 + $0x60] sm:$0xff]
          %v1271 = vld [vmem:[#allocation11 + $0x68] sm:$0xff]
          %v1272 = vld [vmem:[#allocation11 + $0x70] sm:$0xff]
          %v1273 = vld [vmem:[#allocation11 + $0x78] sm:$0xff]
          %v1274 = vld [vmem:[%s7] sm:$0x1]
          %v1276 = vlaneseq
          %v1277 = vshrl.u32 %v1276, 7
          %v1278 = vsub.s32 0, %v1277
          %v1279 = vrot.slane %v1274, %v1278
          %1281 = vmatprep.subr.mxu0 0.0
          %1282 = vmatpush1.msra.mxu0 %v1258
          %1283 = vmatprep.subr.mxu0 0.0
          %1284 = vmatpush1.msra.mxu0 %v1259
          %1285 = vmatprep.subr.mxu0 0.0
          %1286 = vmatpush1.msra.mxu0 %v1260
          %1287 = vmatprep.subr.mxu0 0.0
          %1288 = vmatpush1.msra.mxu0 %v1261
          %1289 = vmatprep.subr.mxu0 0.0
          %1290 = vmatpush1.msra.mxu0 %v1262
          %1291 = vmatprep.subr.mxu0 0.0
          %1292 = vmatpush1.msra.mxu0 %v1263
          %1293 = vmatprep.subr.mxu0 0.0
          %1294 = vmatpush1.msra.mxu0 %v1264
          %1295 = vmatprep.subr.mxu0 0.0
          %1296 = vmatpush1.msra.mxu0 %v1265
          %1297 = vmatprep.subr.mxu0 0.0
          %1298 = vmatpush1.msra.mxu0 %v1266
          %1299 = vmatprep.subr.mxu0 0.0
          %1300 = vmatpush1.msra.mxu0 %v1267
          %1301 = vmatprep.subr.mxu0 0.0
          %1302 = vmatpush1.msra.mxu0 %v1268
          %1303 = vmatprep.subr.mxu0 0.0
          %1304 = vmatpush1.msra.mxu0 %v1269
          %1305 = vmatprep.subr.mxu0 0.0
          %1306 = vmatpush1.msra.mxu0 %v1270
          %1307 = vmatprep.subr.mxu0 0.0
          %1308 = vmatpush1.msra.mxu0 %v1271
          %1309 = vmatprep.subr.mxu0 0.0
          %1310 = vmatpush1.msra.mxu0 %v1272
          %1311 = vmatprep.subr.mxu0 0.0
          %1312 = vmatpush1.msra.mxu0 %v1273
          %1313 = vmatprep.subr.mxu0 0.0
          %1314 = vmatpush1.msra.mxu0 0.0
          %1315 = vmatprep.subr.mxu0 0.0
          %1316 = vmatpush1.msra.mxu0 0.0
          %1317 = vmatprep.subr.mxu0 0.0
          %1318 = vmatpush1.msra.mxu0 0.0
          %1319 = vmatprep.subr.mxu0 0.0
          %1320 = vmatpush1.msra.mxu0 0.0
          %1321 = vmatprep.subr.mxu0 0.0
          %1322 = vmatpush1.msra.mxu0 0.0
          %1323 = vmatprep.subr.mxu0 0.0
          %1324 = vmatpush1.msra.mxu0 0.0
          %1325 = vmatprep.subr.mxu0 0.0
          %1326 = vmatpush1.msra.mxu0 0.0
          %1327 = vmatprep.subr.mxu0 0.0
          %1328 = vmatpush1.msra.mxu0 0.0
          %1329 = vmatprep.subr.mxu0 0.0
          %1330 = vmatpush1.msra.mxu0 0.0
          %1331 = vmatprep.subr.mxu0 0.0
          %1332 = vmatpush1.msra.mxu0 0.0
          %1333 = vmatprep.subr.mxu0 0.0
          %1334 = vmatpush1.msra.mxu0 0.0
          %1335 = vmatprep.subr.mxu0 0.0
          %1336 = vmatpush1.msra.mxu0 0.0
          %1337 = vmatprep.subr.mxu0 0.0
          %1338 = vmatpush1.msra.mxu0 0.0
          %1339 = vmatprep.subr.mxu0 0.0
          %1340 = vmatpush1.msra.mxu0 0.0
          %1341 = vmatprep.subr.mxu0 0.0
          %1342 = vmatpush1.msra.mxu0 0.0
          %1343 = vmatprep.subr.mxu0 0.0
          %1344 = vmatpush1.msra.mxu0 0.0
          %1345 = vmatprep.mubr.f32.mxu0 0.0
          %1346 = vmatmul.mubr.f32.gmra.mrb[0].mxu0 %v1256
          %v1347 = vpop.f32.mrb[0].mxu0
          %v1348 = vadd.f32 %v1279, %v1347
          %v1349 = vpop.f32.mrb[0].mxu0
          %1350 = vdwg.mxu0
          %s1351 = scalar_lea.vmem [#allocation13], 8
          %1352 = vst [vmem:[%s1351] sm:$0x3] %v1348
          %s1353 = scalar_lea.vmem [#allocation12], 10
          %v1354 = vld [vmem:[%s1353] sm:$0x3]
          %v1355 = vmax.f32 %v1354, 0.0
          %1356 = vst [vmem:[%s1353] sm:$0x3] %v1355
          %v1357 = vld [vmem:[#allocation11] sm:$0xff]
          %v1358 = vld [vmem:[#allocation11 + $0x8] sm:$0xff]
          %v1359 = vld [vmem:[#allocation11 + $0x10] sm:$0xff]
          %v1360 = vld [vmem:[#allocation11 + $0x18] sm:$0xff]
          %v1361 = vld [vmem:[#allocation11 + $0x20] sm:$0xff]
          %v1362 = vld [vmem:[#allocation11 + $0x28] sm:$0xff]
          %v1363 = vld [vmem:[#allocation11 + $0x30] sm:$0xff]
          %v1364 = vld [vmem:[#allocation11 + $0x38] sm:$0xff]
          %v1365 = vld [vmem:[#allocation11 + $0x40] sm:$0xff]
          %v1366 = vld [vmem:[#allocation11 + $0x48] sm:$0xff]
          %v1367 = vld [vmem:[#allocation11 + $0x50] sm:$0xff]
          %v1368 = vld [vmem:[#allocation11 + $0x58] sm:$0xff]
          %v1369 = vld [vmem:[#allocation11 + $0x60] sm:$0xff]
          %v1370 = vld [vmem:[#allocation11 + $0x68] sm:$0xff]
          %v1371 = vld [vmem:[#allocation11 + $0x70] sm:$0xff]
          %v1372 = vld [vmem:[#allocation11 + $0x78] sm:$0xff]
          %v1373 = vld [vmem:[%s7] sm:$0x1]
          %v1375 = vlaneseq
          %v1376 = vshrl.u32 %v1375, 7
          %v1377 = vsub.s32 0, %v1376
          %v1378 = vrot.slane %v1373, %v1377
          %1380 = vmatprep.subr.mxu0 0.0
          %1381 = vmatpush1.msra.mxu0 %v1357
          %1382 = vmatprep.subr.mxu0 0.0
          %1383 = vmatpush1.msra.mxu0 %v1358
          %1384 = vmatprep.subr.mxu0 0.0
          %1385 = vmatpush1.msra.mxu0 %v1359
          %1386 = vmatprep.subr.mxu0 0.0
          %1387 = vmatpush1.msra.mxu0 %v1360
          %1388 = vmatprep.subr.mxu0 0.0
          %1389 = vmatpush1.msra.mxu0 %v1361
          %1390 = vmatprep.subr.mxu0 0.0
          %1391 = vmatpush1.msra.mxu0 %v1362
          %1392 = vmatprep.subr.mxu0 0.0
          %1393 = vmatpush1.msra.mxu0 %v1363
          %1394 = vmatprep.subr.mxu0 0.0
          %1395 = vmatpush1.msra.mxu0 %v1364
          %1396 = vmatprep.subr.mxu0 0.0
          %1397 = vmatpush1.msra.mxu0 %v1365
          %1398 = vmatprep.subr.mxu0 0.0
          %1399 = vmatpush1.msra.mxu0 %v1366
          %1400 = vmatprep.subr.mxu0 0.0
          %1401 = vmatpush1.msra.mxu0 %v1367
          %1402 = vmatprep.subr.mxu0 0.0
          %1403 = vmatpush1.msra.mxu0 %v1368
          %1404 = vmatprep.subr.mxu0 0.0
          %1405 = vmatpush1.msra.mxu0 %v1369
          %1406 = vmatprep.subr.mxu0 0.0
          %1407 = vmatpush1.msra.mxu0 %v1370
          %1408 = vmatprep.subr.mxu0 0.0
          %1409 = vmatpush1.msra.mxu0 %v1371
          %1410 = vmatprep.subr.mxu0 0.0
          %1411 = vmatpush1.msra.mxu0 %v1372
          %1412 = vmatprep.subr.mxu0 0.0
          %1413 = vmatpush1.msra.mxu0 0.0
          %1414 = vmatprep.subr.mxu0 0.0
          %1415 = vmatpush1.msra.mxu0 0.0
          %1416 = vmatprep.subr.mxu0 0.0
          %1417 = vmatpush1.msra.mxu0 0.0
          %1418 = vmatprep.subr.mxu0 0.0
          %1419 = vmatpush1.msra.mxu0 0.0
          %1420 = vmatprep.subr.mxu0 0.0
          %1421 = vmatpush1.msra.mxu0 0.0
          %1422 = vmatprep.subr.mxu0 0.0
          %1423 = vmatpush1.msra.mxu0 0.0
          %1424 = vmatprep.subr.mxu0 0.0
          %1425 = vmatpush1.msra.mxu0 0.0
          %1426 = vmatprep.subr.mxu0 0.0
          %1427 = vmatpush1.msra.mxu0 0.0
          %1428 = vmatprep.subr.mxu0 0.0
          %1429 = vmatpush1.msra.mxu0 0.0
          %1430 = vmatprep.subr.mxu0 0.0
          %1431 = vmatpush1.msra.mxu0 0.0
          %1432 = vmatprep.subr.mxu0 0.0
          %1433 = vmatpush1.msra.mxu0 0.0
          %1434 = vmatprep.subr.mxu0 0.0
          %1435 = vmatpush1.msra.mxu0 0.0
          %1436 = vmatprep.subr.mxu0 0.0
          %1437 = vmatpush1.msra.mxu0 0.0
          %1438 = vmatprep.subr.mxu0 0.0
          %1439 = vmatpush1.msra.mxu0 0.0
          %1440 = vmatprep.subr.mxu0 0.0
          %1441 = vmatpush1.msra.mxu0 0.0
          %1442 = vmatprep.subr.mxu0 0.0
          %1443 = vmatpush1.msra.mxu0 0.0
          %1444 = vmatprep.mubr.f32.mxu0 0.0
          %1445 = vmatmul.mubr.f32.gmra.mrb[0].mxu0 %v1355
          %v1446 = vpop.f32.mrb[0].mxu0
          %v1447 = vadd.f32 %v1378, %v1446
          %v1448 = vpop.f32.mrb[0].mxu0
          %1449 = vdwg.mxu0
          %s1450 = scalar_lea.vmem [#allocation13], 10
          %1451 = vst [vmem:[%s1450] sm:$0x3] %v1447
          %s1452 = scalar_lea.vmem [#allocation12], 12
          %v1453 = vld [vmem:[%s1452] sm:$0x3]
          %v1454 = vmax.f32 %v1453, 0.0
          %1455 = vst [vmem:[%s1452] sm:$0x3] %v1454
          %v1456 = vld [vmem:[#allocation11] sm:$0xff]
          %v1457 = vld [vmem:[#allocation11 + $0x8] sm:$0xff]
          %v1458 = vld [vmem:[#allocation11 + $0x10] sm:$0xff]
          %v1459 = vld [vmem:[#allocation11 + $0x18] sm:$0xff]
          %v1460 = vld [vmem:[#allocation11 + $0x20] sm:$0xff]
          %v1461 = vld [vmem:[#allocation11 + $0x28] sm:$0xff]
          %v1462 = vld [vmem:[#allocation11 + $0x30] sm:$0xff]
          %v1463 = vld [vmem:[#allocation11 + $0x38] sm:$0xff]
          %v1464 = vld [vmem:[#allocation11 + $0x40] sm:$0xff]
          %v1465 = vld [vmem:[#allocation11 + $0x48] sm:$0xff]
          %v1466 = vld [vmem:[#allocation11 + $0x50] sm:$0xff]
          %v1467 = vld [vmem:[#allocation11 + $0x58] sm:$0xff]
          %v1468 = vld [vmem:[#allocation11 + $0x60] sm:$0xff]
          %v1469 = vld [vmem:[#allocation11 + $0x68] sm:$0xff]
          %v1470 = vld [vmem:[#allocation11 + $0x70] sm:$0xff]
          %v1471 = vld [vmem:[#allocation11 + $0x78] sm:$0xff]
          %v1472 = vld [vmem:[%s7] sm:$0x1]
          %v1474 = vlaneseq
          %v1475 = vshrl.u32 %v1474, 7
          %v1476 = vsub.s32 0, %v1475
          %v1477 = vrot.slane %v1472, %v1476
          %1479 = vmatprep.subr.mxu0 0.0
          %1480 = vmatpush1.msra.mxu0 %v1456
          %1481 = vmatprep.subr.mxu0 0.0
          %1482 = vmatpush1.msra.mxu0 %v1457
          %1483 = vmatprep.subr.mxu0 0.0
          %1484 = vmatpush1.msra.mxu0 %v1458
          %1485 = vmatprep.subr.mxu0 0.0
          %1486 = vmatpush1.msra.mxu0 %v1459
          %1487 = vmatprep.subr.mxu0 0.0
          %1488 = vmatpush1.msra.mxu0 %v1460
          %1489 = vmatprep.subr.mxu0 0.0
          %1490 = vmatpush1.msra.mxu0 %v1461
          %1491 = vmatprep.subr.mxu0 0.0
          %1492 = vmatpush1.msra.mxu0 %v1462
          %1493 = vmatprep.subr.mxu0 0.0
          %1494 = vmatpush1.msra.mxu0 %v1463
          %1495 = vmatprep.subr.mxu0 0.0
          %1496 = vmatpush1.msra.mxu0 %v1464
          %1497 = vmatprep.subr.mxu0 0.0
          %1498 = vmatpush1.msra.mxu0 %v1465
          %1499 = vmatprep.subr.mxu0 0.0
          %1500 = vmatpush1.msra.mxu0 %v1466
          %1501 = vmatprep.subr.mxu0 0.0
          %1502 = vmatpush1.msra.mxu0 %v1467
          %1503 = vmatprep.subr.mxu0 0.0
          %1504 = vmatpush1.msra.mxu0 %v1468
          %1505 = vmatprep.subr.mxu0 0.0
          %1506 = vmatpush1.msra.mxu0 %v1469
          %1507 = vmatprep.subr.mxu0 0.0
          %1508 = vmatpush1.msra.mxu0 %v1470
          %1509 = vmatprep.subr.mxu0 0.0
          %1510 = vmatpush1.msra.mxu0 %v1471
          %1511 = vmatprep.subr.mxu0 0.0
          %1512 = vmatpush1.msra.mxu0 0.0
          %1513 = vmatprep.subr.mxu0 0.0
          %1514 = vmatpush1.msra.mxu0 0.0
          %1515 = vmatprep.subr.mxu0 0.0
          %1516 = vmatpush1.msra.mxu0 0.0
          %1517 = vmatprep.subr.mxu0 0.0
          %1518 = vmatpush1.msra.mxu0 0.0
          %1519 = vmatprep.subr.mxu0 0.0
          %1520 = vmatpush1.msra.mxu0 0.0
          %1521 = vmatprep.subr.mxu0 0.0
          %1522 = vmatpush1.msra.mxu0 0.0
          %1523 = vmatprep.subr.mxu0 0.0
          %1524 = vmatpush1.msra.mxu0 0.0
          %1525 = vmatprep.subr.mxu0 0.0
          %1526 = vmatpush1.msra.mxu0 0.0
          %1527 = vmatprep.subr.mxu0 0.0
          %1528 = vmatpush1.msra.mxu0 0.0
          %1529 = vmatprep.subr.mxu0 0.0
          %1530 = vmatpush1.msra.mxu0 0.0
          %1531 = vmatprep.subr.mxu0 0.0
          %1532 = vmatpush1.msra.mxu0 0.0
          %1533 = vmatprep.subr.mxu0 0.0
          %1534 = vmatpush1.msra.mxu0 0.0
          %1535 = vmatprep.subr.mxu0 0.0
          %1536 = vmatpush1.msra.mxu0 0.0
          %1537 = vmatprep.subr.mxu0 0.0
          %1538 = vmatpush1.msra.mxu0 0.0
          %1539 = vmatprep.subr.mxu0 0.0
          %1540 = vmatpush1.msra.mxu0 0.0
          %1541 = vmatprep.subr.mxu0 0.0
          %1542 = vmatpush1.msra.mxu0 0.0
          %1543 = vmatprep.mubr.f32.mxu0 0.0
          %1544 = vmatmul.mubr.f32.gmra.mrb[0].mxu0 %v1454
          %v1545 = vpop.f32.mrb[0].mxu0
          %v1546 = vadd.f32 %v1477, %v1545
          %v1547 = vpop.f32.mrb[0].mxu0
          %1548 = vdwg.mxu0
          %s1549 = scalar_lea.vmem [#allocation13], 12
          %1550 = vst [vmem:[%s1549] sm:$0x3] %v1546
          %s1551 = scalar_lea.vmem [#allocation12], 14
          %v1552 = vld [vmem:[%s1551] sm:$0x3]
          %v1553 = vmax.f32 %v1552, 0.0
          %1554 = vst [vmem:[%s1551] sm:$0x3] %v1553
          %v1555 = vld [vmem:[#allocation11] sm:$0xff]
          %v1556 = vld [vmem:[#allocation11 + $0x8] sm:$0xff]
          %v1557 = vld [vmem:[#allocation11 + $0x10] sm:$0xff]
          %v1558 = vld [vmem:[#allocation11 + $0x18] sm:$0xff]
          %v1559 = vld [vmem:[#allocation11 + $0x20] sm:$0xff]
          %v1560 = vld [vmem:[#allocation11 + $0x28] sm:$0xff]
          %v1561 = vld [vmem:[#allocation11 + $0x30] sm:$0xff]
          %v1562 = vld [vmem:[#allocation11 + $0x38] sm:$0xff]
          %v1563 = vld [vmem:[#allocation11 + $0x40] sm:$0xff]
          %v1564 = vld [vmem:[#allocation11 + $0x48] sm:$0xff]
          %v1565 = vld [vmem:[#allocation11 + $0x50] sm:$0xff]
          %v1566 = vld [vmem:[#allocation11 + $0x58] sm:$0xff]
          %v1567 = vld [vmem:[#allocation11 + $0x60] sm:$0xff]
          %v1568 = vld [vmem:[#allocation11 + $0x68] sm:$0xff]
          %v1569 = vld [vmem:[#allocation11 + $0x70] sm:$0xff]
          %v1570 = vld [vmem:[#allocation11 + $0x78] sm:$0xff]
          %v1571 = vld [vmem:[%s7] sm:$0x1]
          %v1573 = vlaneseq
          %v1574 = vshrl.u32 %v1573, 7
          %v1575 = vsub.s32 0, %v1574
          %v1576 = vrot.slane %v1571, %v1575
          %1578 = vmatprep.subr.mxu0 0.0
          %1579 = vmatpush1.msra.mxu0 %v1555
          %1580 = vmatprep.subr.mxu0 0.0
          %1581 = vmatpush1.msra.mxu0 %v1556
          %1582 = vmatprep.subr.mxu0 0.0
          %1583 = vmatpush1.msra.mxu0 %v1557
          %1584 = vmatprep.subr.mxu0 0.0
          %1585 = vmatpush1.msra.mxu0 %v1558
          %1586 = vmatprep.subr.mxu0 0.0
          %1587 = vmatpush1.msra.mxu0 %v1559
          %1588 = vmatprep.subr.mxu0 0.0
          %1589 = vmatpush1.msra.mxu0 %v1560
          %1590 = vmatprep.subr.mxu0 0.0
          %1591 = vmatpush1.msra.mxu0 %v1561
          %1592 = vmatprep.subr.mxu0 0.0
          %1593 = vmatpush1.msra.mxu0 %v1562
          %1594 = vmatprep.subr.mxu0 0.0
          %1595 = vmatpush1.msra.mxu0 %v1563
          %1596 = vmatprep.subr.mxu0 0.0
          %1597 = vmatpush1.msra.mxu0 %v1564
          %1598 = vmatprep.subr.mxu0 0.0
          %1599 = vmatpush1.msra.mxu0 %v1565
          %1600 = vmatprep.subr.mxu0 0.0
          %1601 = vmatpush1.msra.mxu0 %v1566
          %1602 = vmatprep.subr.mxu0 0.0
          %1603 = vmatpush1.msra.mxu0 %v1567
          %1604 = vmatprep.subr.mxu0 0.0
          %1605 = vmatpush1.msra.mxu0 %v1568
          %1606 = vmatprep.subr.mxu0 0.0
          %1607 = vmatpush1.msra.mxu0 %v1569
          %1608 = vmatprep.subr.mxu0 0.0
          %1609 = vmatpush1.msra.mxu0 %v1570
          %1610 = vmatprep.subr.mxu0 0.0
          %1611 = vmatpush1.msra.mxu0 0.0
          %1612 = vmatprep.subr.mxu0 0.0
          %1613 = vmatpush1.msra.mxu0 0.0
          %1614 = vmatprep.subr.mxu0 0.0
          %1615 = vmatpush1.msra.mxu0 0.0
          %1616 = vmatprep.subr.mxu0 0.0
          %1617 = vmatpush1.msra.mxu0 0.0
          %1618 = vmatprep.subr.mxu0 0.0
          %1619 = vmatpush1.msra.mxu0 0.0
          %1620 = vmatprep.subr.mxu0 0.0
          %1621 = vmatpush1.msra.mxu0 0.0
          %1622 = vmatprep.subr.mxu0 0.0
          %1623 = vmatpush1.msra.mxu0 0.0
          %1624 = vmatprep.subr.mxu0 0.0
          %1625 = vmatpush1.msra.mxu0 0.0
          %1626 = vmatprep.subr.mxu0 0.0
          %1627 = vmatpush1.msra.mxu0 0.0
          %1628 = vmatprep.subr.mxu0 0.0
          %1629 = vmatpush1.msra.mxu0 0.0
          %1630 = vmatprep.subr.mxu0 0.0
          %1631 = vmatpush1.msra.mxu0 0.0
          %1632 = vmatprep.subr.mxu0 0.0
          %1633 = vmatpush1.msra.mxu0 0.0
          %1634 = vmatprep.subr.mxu0 0.0
          %1635 = vmatpush1.msra.mxu0 0.0
          %1636 = vmatprep.subr.mxu0 0.0
          %1637 = vmatpush1.msra.mxu0 0.0
          %1638 = vmatprep.subr.mxu0 0.0
          %1639 = vmatpush1.msra.mxu0 0.0
          %1640 = vmatprep.subr.mxu0 0.0
          %1641 = vmatpush1.msra.mxu0 0.0
          %1642 = vmatprep.mubr.f32.mxu0 0.0
          %1643 = vmatmul.mubr.f32.gmra.mrb[0].mxu0 %v1553
          %v1644 = vpop.f32.mrb[0].mxu0
          %v1645 = vadd.f32 %v1576, %v1644
          %v1646 = vpop.f32.mrb[0].mxu0
          %1647 = vdwg.mxu0
          %s1648 = scalar_lea.vmem [#allocation13], 14
          %1649 = vst [vmem:[%s1648] sm:$0x3] %v1645
        $region80: #{tpu_custom_call.1} parent=51 // pred_fallthru
          _
        // Predicated region
        $region81: #{tpu_custom_call.1} parent=51 // pred_check
          %p1650 = pneg %p223
        $region82: #{tpu_custom_call.1} parent=51 // pred_check_branch
          %1652 = sbr.rel (%p1650) target = $region84
        $region83: #{tpu_custom_call.1} parent=51 // pred_region
          %s1654 = ssub.s32 256, 256
          %1655 = vsyncadd [#allocation5], %s1654
          %s1656 = sshll.u32 [#allocation12], 4
          %s1657 = int_to_ptr.vmem [resolvable:$true] %s1656
          %1662 = dma.vmem_to_hbm [thread:$0]  %s1657, 256, %s8, [#allocation5], 32, 32, 2
        $region84: #{tpu_custom_call.1} parent=51 // pred_fallthru
          _
        // Predicated region
        $region85: #{tpu_custom_call.1} parent=51 // pred_check
          %p1663 = pneg %p244
        $region86: #{tpu_custom_call.1} parent=51 // pred_check_branch
          %1665 = sbr.rel (%p1663) target = $region88
        $region87: #{tpu_custom_call.1} parent=51 // pred_region
          %s1667 = ssub.s32 256, 256
          %1668 = vsyncadd [#allocation14], %s1667
          %s1669 = sshll.u32 [#allocation13], 4
          %s1670 = int_to_ptr.vmem [resolvable:$true] %s1669
          %1675 = dma.vmem_to_hbm [thread:$0]  %s1670, 256, %s9, [#allocation14], 32, 32, 2
        $region88: #{tpu_custom_call.1} parent=51 // pred_fallthru
          _
        // Predicated region
        $region89: #{tpu_custom_call.1} parent=51 // pred_check
          %p1676 = pneg %p223
        $region90: #{tpu_custom_call.1} parent=51 // pred_check_branch
          %1678 = sbr.rel (%p1676) target = $region92
        $region91: #{tpu_custom_call.1} parent=51 // pred_region
          %1679 = dma.done [#allocation5], 256
        $region92: #{tpu_custom_call.1} parent=51 // pred_fallthru
          _
        // Predicated region
        $region93: #{tpu_custom_call.1} parent=51 // pred_check
          %p1680 = pneg %p244
        $region94: #{tpu_custom_call.1} parent=51 // pred_check_branch
          %1682 = sbr.rel (%p1680) target = $region96
        $region95: #{tpu_custom_call.1} parent=51 // pred_region
          %1683 = dma.done [#allocation14], 256
        $region96: #{tpu_custom_call.1} parent=51 // pred_fallthru
          _
      $region52: #{tpu_custom_call.1} parent=5 // pred_fallthru
        _
      %p1684 = scmp.le.s32.totalorder 2, %s25
      // Predicated region
      $region97: #{tpu_custom_call.1} parent=5 // pred_check
        %p1685 = pneg %p1684
      $region98: #{tpu_custom_call.1} parent=5 // pred_check_branch
        %1687 = sbr.rel (%p1685) target = $region100
      $region99: #{tpu_custom_call.1} parent=5 // pred_region
        %s1688 = ssub.s32 %s25, 2
      $region100: #{tpu_custom_call.1} parent=5 // pred_fallthru
        _
    $region6: #{tpu_custom_call.1} parent=1 // loop_footer
      %s29 = sadd.s32 1, %s25
    $region7: #{tpu_custom_call.1} parent=1 // loop_footer_branch
      %24 = sbr.rel target = $region3
    $region8: #{tpu_custom_call.1} parent=1 // loop_exit
      _
    %1689 = vsyncpa [#allocation4], 1
    %s1690 = scalar_lea.sflag [#allocation4], 1
    %1691 = vsyncpa %s1690, 1
    %1692 = vsyncpa [#allocation7], 1
    %s1693 = scalar_lea.sflag [#allocation7], 1
    %1694 = vsyncpa %s1693, 1
    %1695 = vsyncpa [#allocation10], 1
    %1696 = vsyncpa [#allocation5], 1
    %s1697 = scalar_lea.sflag [#allocation5], 1
    %1698 = vsyncpa %s1697, 1
    %1699 = vsyncpa [#allocation14], 1

</llo_original>
